<compile_context>
chip_gen: v6e
topology: v6e:2x2x1
jax: 0.10.0
libtpu: 0.0.40
codegen_flags: <defaults>
</compile_context>

<pallas_src>
import numpy as np
import jax
import jax.numpy as jnp
from jax.experimental import pallas as pl
from jax.experimental.pallas import tpu as pltpu

SIGMA = 7.1e-07


# ----------------------------------------------------------------------------
# helpers
# ----------------------------------------------------------------------------
def _mosaic_params(dims, vmem_bytes):
    limit = int(min(64 * 1024 * 1024, max(32 * 1024 * 1024, vmem_bytes)))
    return pltpu.CompilerParams(dimension_semantics=dims, vmem_limit_bytes=limit)


def _build_matrices(H, W, wr, wc):
    """DFT matrices.

    setup_f32 : plain DFT matrices (for fft2(dirty)) plus DFT matrices with the
                ifftshift permutation folded in (for fft2(ifftshift(psf))).
    loop_bf16 : forward DFT matrices, inverse column matrices with conj and the
                1/(H*W) scale folded in, and the banded separable-conv matrices
                of the surrogate denoiser.
    """
    def dft(n):
        k = np.arange(n)
        ang = -2.0 * np.pi * np.outer(k, k) / float(n)
        return np.cos(ang).astype(np.float32), np.sin(ang).astype(np.float32)

    fhr, fhi = dft(H)                       # F_H = fhr + i*fhi
    fwr, fwi = dft(W)                       # F_W = fwr + i*fwi

    # ifftshift permutation matrices:  S @ x == ifftshift(x)
    sh = np.fft.ifftshift(np.eye(H, dtype=np.float32), axes=0)
    sw = np.fft.ifftshift(np.eye(W, dtype=np.float32), axes=0)
    # fft2(ifftshift2(X)) = (F_H S_H) X (S_W^T F_W)
    ahr, ahi = fhr @ sh, fhi @ sh
    bwr, bwi = sw.T @ fwr, sw.T @ fwi

    s = np.float32(1.0 / (H * W))
    gwr = fwr * s                           # Re(conj(F_W)) / (H*W)
    gwi = -fwi * s                          # Im(conj(F_W)) / (H*W)

    # zero-padded separable 3x3 conv:  conv(x) = C_H @ x @ C_W
    ch = sum(np.float32(wr[d + 1]) * np.eye(H, k=d, dtype=np.float32)
             for d in (-1, 0, 1))
    cw = sum(np.float32(wc[d + 1]) * np.eye(W, k=-d, dtype=np.float32)
             for d in (-1, 0, 1))

    f32 = lambda a: jnp.asarray(a, jnp.float32)
    b16 = lambda a: jnp.asarray(a, jnp.bfloat16)
    return {
        "setup_f32": (f32(fhr), f32(fhi), f32(fwr), f32(fwi),
                      f32(ahr), f32(ahi), f32(bwr), f32(bwi)),
        "loop_bf16": (b16(fhr), b16(fhi), b16(fwr), b16(fwi),
                      b16(gwr), b16(gwi), b16(ch), b16(cw)),
    }


# ----------------------------------------------------------------------------
# Kernel A: one-time setup.  Per batch element: fft2(dirty), fft2(ifftshift(psf))
#           (ifftshift folded into the DFT matrices), then the Wiener constants
#           cr = Re(conj(fpsf)*fd), ci = Im(conj(fpsf)*fd), p2 = |fpsf|^2, all f32.
# ----------------------------------------------------------------------------
def _setup_kernel(im_ref, fhr_ref, fhi_ref, fwr_ref, fwi_ref,
                  ahr_ref, ahi_ref, bwr_ref, bwi_ref,
                  cr_ref, ci_ref, p2_ref):
    f32 = jnp.float32
    dirty = im_ref[0, 0]
    psf = im_ref[0, 1]

    # fft2(dirty)
    tr = jnp.dot(fhr_ref[...], dirty, preferred_element_type=f32)
    ti = jnp.dot(fhi_ref[...], dirty, preferred_element_type=f32)
    fdr = (jnp.dot(tr, fwr_ref[...], preferred_element_type=f32)
           - jnp.dot(ti, fwi_ref[...], preferred_element_type=f32))
    fdi = (jnp.dot(tr, fwi_ref[...], preferred_element_type=f32)
           + jnp.dot(ti, fwr_ref[...], preferred_element_type=f32))

    # fft2(ifftshift(psf))  (shift permutation folded into ahr/ahi/bwr/bwi)
    ur = jnp.dot(ahr_ref[...], psf, preferred_element_type=f32)
    ui = jnp.dot(ahi_ref[...], psf, preferred_element_type=f32)
    fpr = (jnp.dot(ur, bwr_ref[...], preferred_element_type=f32)
           - jnp.dot(ui, bwi_ref[...], preferred_element_type=f32))
    fpi = (jnp.dot(ur, bwi_ref[...], preferred_element_type=f32)
           + jnp.dot(ui, bwr_ref[...], preferred_element_type=f32))

    cr_ref[0] = fpr * fdr + fpi * fdi          # Re(conj(fpsf) * fft2(dirty))
    ci_ref[0] = fpr * fdi - fpi * fdr          # Im(conj(fpsf) * fft2(dirty))
    p2_ref[0] = fpr * fpr + fpi * fpi          # |fpsf|^2


def wiener_setup(im, mats_f32):
    B, _, H, W = im.shape
    img_in = pl.BlockSpec((1, 2, H, W), lambda n: (n, 0, 0, 0))
    img_out = pl.BlockSpec((1, H, W), lambda n: (n, 0, 0))
    mh = pl.BlockSpec((H, H), lambda n: (0, 0))
    mw = pl.BlockSpec((W, W), lambda n: (0, 0))
    vmem = (2 * 2 * H * W * 4                       # im blocks (double buffered)
            + 2 * 4 * (H * H + W * W) * 4           # f32 matrices
            + 2 * 3 * H * W * 4                     # outputs
            + 16 * H * W * 4)                       # temporaries headroom
    out_sd = jax.ShapeDtypeStruct((B, H, W), jnp.float32)
    return pl.pallas_call(
        _setup_kernel,
        grid=(B,),
        in_specs=[img_in, mh, mh, mw, mw, mh, mh, mw, mw],
        out_specs=(img_out, img_out, img_out),
        out_shape=(out_sd, out_sd, out_sd),
        compiler_params=_mosaic_params(("parallel",), vmem),
    )(im, *mats_f32)


# ----------------------------------------------------------------------------
# Kernel B: the fused HQS loop.  grid=(B, niter); z carried in VMEM scratch.
#   per iteration:  x = real(ifft2((cr + i*ci + alpha*fft2(z)) / (p2 + alpha)))
#                   z = C_H @ x @ C_W + (wsig*sigma + bias)    (surrogate denoiser)
# ----------------------------------------------------------------------------
def _hqs_loop_kernel(alpha_ref, offs_ref,
                     dirty_ref, cr_ref, ci_ref, p2_ref,
                     fhr_ref, fhi_ref, fwr_ref, fwi_ref, gwr_ref, gwi_ref,
                     ch_ref, cw_ref,
                     out_ref, z_scr):
    k = pl.program_id(1)
    f32 = jnp.float32
    bf16 = jnp.bfloat16

    @pl.when(k == 0)
    def _init():
        z_scr[...] = dirty_ref[0, 0]

    alpha = alpha_ref[k]

    # ---- fft2(z): row DFT (H) then column DFT (W); bf16 MXU, f32 accumulate ----
    zb = z_scr[...].astype(bf16)
    ar = jnp.dot(fhr_ref[...], zb, preferred_element_type=f32)
    ai = jnp.dot(fhi_ref[...], zb, preferred_element_type=f32)
    arb = ar.astype(bf16)
    aib = ai.astype(bf16)
    zr = (jnp.dot(arb, fwr_ref[...], preferred_element_type=f32)
          - jnp.dot(aib, fwi_ref[...], preferred_element_type=f32))
    zi = (jnp.dot(arb, fwi_ref[...], preferred_element_type=f32)
          + jnp.dot(aib, fwr_ref[...], preferred_element_type=f32))

    # ---- Wiener / data-consistency update (Eq. 13); constants precomputed,
    #      division replaced by one EUP reciprocal ----
    inv = pl.reciprocal(p2_ref[0] + alpha, approx=True)
    xr = ((cr_ref[0] + alpha * zr) * inv).astype(bf16)
    xi = ((ci_ref[0] + alpha * zi) * inv).astype(bf16)

    # ---- x = real(ifft2(.)): row stage uses conj(F_H) = fhr - i*fhi, column
    #      stage uses conj(F_W)/(H*W) pre-folded into gwr/gwi ----
    pr = (jnp.dot(fhr_ref[...], xr, preferred_element_type=f32)
          + jnp.dot(fhi_ref[...], xi, preferred_element_type=f32))
    pi = (jnp.dot(fhr_ref[...], xi, preferred_element_type=f32)
          - jnp.dot(fhi_ref[...], xr, preferred_element_type=f32))
    x = (jnp.dot(pr.astype(bf16), gwr_ref[...], preferred_element_type=f32)
         - jnp.dot(pi.astype(bf16), gwi_ref[...], preferred_element_type=f32))

    # ---- surrogate denoiser: separable zero-padded 3x3 conv as two banded
    #      matmuls + prefolded affine sigma term (x never leaves VMEM) ----
    y = jnp.dot(ch_ref[...], x.astype(bf16), preferred_element_type=f32)
    z_new = (jnp.dot(y.astype(bf16), cw_ref[...], preferred_element_type=f32)
             + offs_ref[k])
    z_scr[...] = z_new

    @pl.when(k == pl.num_programs(1) - 1)
    def _finalize():
        out_ref[0] = z_new


def hqs_iterations(alphas, offs, im, cr, ci, p2, mats_bf16):
    B, _, H, W = im.shape
    niter = int(alphas.shape[0])
    dirty_spec = pl.BlockSpec((1, 1, H, W), lambda b, k: (b, 0, 0, 0))  # channel 0
    img = pl.BlockSpec((1, H, W), lambda b, k: (b, 0, 0))
    mh = pl.BlockSpec((H, H), lambda b, k: (0, 0))    # constant -> DMA'd once
    mw = pl.BlockSpec((W, W), lambda b, k: (0, 0))    # constant -> DMA'd once
    smem = pl.BlockSpec(memory_space=pltpu.MemorySpace.SMEM)
    vmem = (2 * 5 * H * W * 4                         # image blocks + out
            + 2 * (3 * H * H + 5 * W * W) * 2         # bf16 matrices
            + H * W * 4                               # z scratch
            + 20 * H * W * 4)                         # f32 temporaries headroom
    return pl.pallas_call(
        _hqs_loop_kernel,
        grid=(B, niter),
        in_specs=[smem, smem,
                  dirty_spec, img, img, img,
                  mh, mh, mw, mw, mw, mw, mh, mw],
        out_specs=img,
        out_shape=jax.ShapeDtypeStruct((B, H, W), jnp.float32),
        scratch_shapes=[pltpu.VMEM((H, W), jnp.float32)],
        compiler_params=_mosaic_params(("parallel", "arbitrary"), vmem),
    )(alphas, offs, im, cr, ci, p2, *mats_bf16)


# ----------------------------------------------------------------------------
# HQS_PnP module (Pallas version)
# ----------------------------------------------------------------------------
class HQSPnPPallas:
    def __init__(self, niter, f1, f2, falpha, sigma=SIGMA):
        self.niter = niter
        self.sigma_k = np.geomspace(f1 * sigma, f2 * sigma, niter)[::-1].copy()
        self.alpha_k = falpha * sigma ** 2 / self.sigma_k ** 2
        # Deterministic surrogate-denoiser parameters (separable smoothing conv).
        self.wr = np.array([1.0, 2.0, 1.0], np.float32) / 4.0
        self.wc = np.array([1.0, 2.0, 1.0], np.float32) / 4.0
        self.w = np.outer(self.wr, self.wc)        # 3x3, used by the reference
        self.wsig = np.float32(1.0)
        self.bias = np.float32(0.0)
        self._mats = {}

    def _matrices(self, H, W):
        key = (H, W)
        if key not in self._mats:
            self._mats[key] = _build_matrices(H, W, self.wr, self.wc)
        return self._mats[key]

    def __call__(self, im):
        # im: [B, 2, H, W]  (channel 0 = dirty image, channel 1 = PSF)
        B, C, H, W = im.shape
        im = im.astype(jnp.float32)
        mats = self._matrices(H, W)

        # One-time setup: Wiener constants (f32), ifftshift folded into matrices.
        cr, ci, p2 = wiener_setup(im, mats["setup_f32"])

        alphas = jnp.asarray(self.alpha_k, jnp.float32)
        offs = jnp.asarray(self.wsig * self.sigma_k + self.bias, jnp.float32)

        z = hqs_iterations(alphas, offs, im, cr, ci, p2, mats["loop_bf16"])
        return z[:, None, :, :]          # [B, 1, H, W]  (matches PyTorch output)


# ----------------------------------------------------------------------------
# Pure-JAX reference (jnp.fft) of the same forward, for validation
# ----------------------------------------------------------------------------
def reference_forward(im, model):
    dirty = im[:, 0].astype(jnp.float32)
    psf = im[:, 1].astype(jnp.float32)
    fpsf = jnp.fft.fft2(jnp.fft.ifftshift(psf, axes=(-2, -1)))
    fd = jnp.fft.fft2(dirty)
    z = dirty
    H, W = dirty.shape[-2:]
    for alpha, sig in zip(model.alpha_k, model.sigma_k):
        alpha = np.float32(alpha)
        num = jnp.conj(fpsf) * fd + alpha * jnp.fft.fft2(z)
        den = (jnp.conj(fpsf) * fpsf).real + alpha
        x = jnp.real(jnp.fft.ifft2(num / den)).astype(jnp.float32)
        xpad = jnp.pad(x, ((0, 0), (1, 1), (1, 1)))
        acc = jnp.zeros_like(x)
        for ki in range(3):
            for kj in range(3):
                acc = acc + np.float32(model.w[ki, kj]) * xpad[:, ki:ki + H, kj:kj + W]
        z = acc + model.wsig * np.float32(sig) + model.bias
    return z[:, None]


if __name__ == "__main__":
    # Small deterministic example: batch=2, 2 channels (dirty, psf), 16x16 images
    key = jax.random.PRNGKey(0)
    B, H, W = 2, 16, 16
    im = jax.random.normal(key, (B, 2, H, W), dtype=jnp.float32)

    # Hyperparameters (stand-ins for the optuna-tuned f1/f2/falpha), niter kept small
    model = HQSPnPPallas(niter=6, f1=0.5, f2=2.0, falpha=1.0, sigma=SIGMA)

    out = jax.block_until_ready(model(im))

    ref = reference_forward(im, model)
    # hot loop runs in bf16 on the MXU (f32 accumulate) -> slightly looser tolerance
    np.testing.assert_allclose(np.asarray(out), np.asarray(ref),
                               rtol=5e-2, atol=5e-2)
    assert out.shape == (B, 1, H, W)
    print("KERNEL_OK")
</pallas_src>

<mosaic_0001>
module attributes {stable_mosaic.version = 11 : i64} {
  func.func @_setup_kernel(%arg0: i32, %arg1: memref<1x2x16x16xf32, #tpu.memory_space<vmem>>, %arg2: memref<16x16xf32, #tpu.memory_space<vmem>>, %arg3: memref<16x16xf32, #tpu.memory_space<vmem>>, %arg4: memref<16x16xf32, #tpu.memory_space<vmem>>, %arg5: memref<16x16xf32, #tpu.memory_space<vmem>>, %arg6: memref<16x16xf32, #tpu.memory_space<vmem>>, %arg7: memref<16x16xf32, #tpu.memory_space<vmem>>, %arg8: memref<16x16xf32, #tpu.memory_space<vmem>>, %arg9: memref<16x16xf32, #tpu.memory_space<vmem>>, %arg10: memref<1x16x16xf32, #tpu.memory_space<vmem>>, %arg11: memref<1x16x16xf32, #tpu.memory_space<vmem>>, %arg12: memref<1x16x16xf32, #tpu.memory_space<vmem>>) attributes {dimension_semantics = [#tpu.dimension_semantics<parallel>], iteration_bounds = array<i64: 2>, scalar_prefetch = 0 : i64, scratch_operands = 0 : i64, tpu.core_type = #tpu.core_type<tc>, window_params = [{transform_indices = @transform_0, window_bounds = array<i64: 1, 2, 16, 16>}, {pipeline_mode = #tpu.pipeline_mode<synchronous>, transform_indices = @transform_1, window_bounds = array<i64: 16, 16>}, {pipeline_mode = #tpu.pipeline_mode<synchronous>, transform_indices = @transform_2, window_bounds = array<i64: 16, 16>}, {pipeline_mode = #tpu.pipeline_mode<synchronous>, transform_indices = @transform_3, window_bounds = array<i64: 16, 16>}, {pipeline_mode = #tpu.pipeline_mode<synchronous>, transform_indices = @transform_4, window_bounds = array<i64: 16, 16>}, {pipeline_mode = #tpu.pipeline_mode<synchronous>, transform_indices = @transform_5, window_bounds = array<i64: 16, 16>}, {pipeline_mode = #tpu.pipeline_mode<synchronous>, transform_indices = @transform_6, window_bounds = array<i64: 16, 16>}, {pipeline_mode = #tpu.pipeline_mode<synchronous>, transform_indices = @transform_7, window_bounds = array<i64: 16, 16>}, {pipeline_mode = #tpu.pipeline_mode<synchronous>, transform_indices = @transform_8, window_bounds = array<i64: 16, 16>}, {transform_indices = @transform_9, window_bounds = array<i64: 1, 16, 16>}, {transform_indices = @transform_10, window_bounds = array<i64: 1, 16, 16>}, {transform_indices = @transform_11, window_bounds = array<i64: 1, 16, 16>}]} {
    %c0 = arith.constant 0 : index
    %c0_0 = arith.constant 0 : index
    %c0_1 = arith.constant 0 : index
    %c0_2 = arith.constant 0 : index
    %0 = vector.load %arg1[%c0, %c0_0, %c0_1, %c0_2] : memref<1x2x16x16xf32, #tpu.memory_space<vmem>>, vector<1x1x16x16xf32>
    %1 = vector.shape_cast %0 : vector<1x1x16x16xf32> to vector<16x16xf32>
    %c0_3 = arith.constant 0 : index
    %c1 = arith.constant 1 : index
    %c0_4 = arith.constant 0 : index
    %c0_5 = arith.constant 0 : index
    %2 = vector.load %arg1[%c0_3, %c1, %c0_4, %c0_5] : memref<1x2x16x16xf32, #tpu.memory_space<vmem>>, vector<1x1x16x16xf32>
    %3 = vector.shape_cast %2 : vector<1x1x16x16xf32> to vector<16x16xf32>
    %c0_6 = arith.constant 0 : index
    %c0_7 = arith.constant 0 : index
    %4 = vector.load %arg2[%c0_6, %c0_7] : memref<16x16xf32, #tpu.memory_space<vmem>>, vector<16x16xf32>
    %cst = arith.constant dense<0.000000e+00> : vector<16x16xf32>
    %5 = tpu.matmul %4, %1, %cst {dimension_numbers = #tpu.dot_dimension_numbers<[1], [0], [0], [1], [0, 0, 1, 1], [], []>} : vector<16x16xf32>, vector<16x16xf32>, vector<16x16xf32> -> vector<16x16xf32>
    %c0_8 = arith.constant 0 : index
    %c0_9 = arith.constant 0 : index
    %6 = vector.load %arg3[%c0_8, %c0_9] : memref<16x16xf32, #tpu.memory_space<vmem>>, vector<16x16xf32>
    %cst_10 = arith.constant dense<0.000000e+00> : vector<16x16xf32>
    %7 = tpu.matmul %6, %1, %cst_10 {dimension_numbers = #tpu.dot_dimension_numbers<[1], [0], [0], [1], [0, 0, 1, 1], [], []>} : vector<16x16xf32>, vector<16x16xf32>, vector<16x16xf32> -> vector<16x16xf32>
    %c0_11 = arith.constant 0 : index
    %c0_12 = arith.constant 0 : index
    %8 = vector.load %arg4[%c0_11, %c0_12] : memref<16x16xf32, #tpu.memory_space<vmem>>, vector<16x16xf32>
    %cst_13 = arith.constant dense<0.000000e+00> : vector<16x16xf32>
    %9 = tpu.matmul %5, %8, %cst_13 {dimension_numbers = #tpu.dot_dimension_numbers<[1], [0], [0], [1], [0, 0, 1, 1], [], []>} : vector<16x16xf32>, vector<16x16xf32>, vector<16x16xf32> -> vector<16x16xf32>
    %c0_14 = arith.constant 0 : index
    %c0_15 = arith.constant 0 : index
    %10 = vector.load %arg5[%c0_14, %c0_15] : memref<16x16xf32, #tpu.memory_space<vmem>>, vector<16x16xf32>
    %cst_16 = arith.constant dense<0.000000e+00> : vector<16x16xf32>
    %11 = tpu.matmul %7, %10, %cst_16 {dimension_numbers = #tpu.dot_dimension_numbers<[1], [0], [0], [1], [0, 0, 1, 1], [], []>} : vector<16x16xf32>, vector<16x16xf32>, vector<16x16xf32> -> vector<16x16xf32>
    %12 = arith.subf %9, %11 : vector<16x16xf32>
    %c0_17 = arith.constant 0 : index
    %c0_18 = arith.constant 0 : index
    %13 = vector.load %arg5[%c0_17, %c0_18] : memref<16x16xf32, #tpu.memory_space<vmem>>, vector<16x16xf32>
    %cst_19 = arith.constant dense<0.000000e+00> : vector<16x16xf32>
    %14 = tpu.matmul %5, %13, %cst_19 {dimension_numbers = #tpu.dot_dimension_numbers<[1], [0], [0], [1], [0, 0, 1, 1], [], []>} : vector<16x16xf32>, vector<16x16xf32>, vector<16x16xf32> -> vector<16x16xf32>
    %c0_20 = arith.constant 0 : index
    %c0_21 = arith.constant 0 : index
    %15 = vector.load %arg4[%c0_20, %c0_21] : memref<16x16xf32, #tpu.memory_space<vmem>>, vector<16x16xf32>
    %cst_22 = arith.constant dense<0.000000e+00> : vector<16x16xf32>
    %16 = tpu.matmul %7, %15, %cst_22 {dimension_numbers = #tpu.dot_dimension_numbers<[1], [0], [0], [1], [0, 0, 1, 1], [], []>} : vector<16x16xf32>, vector<16x16xf32>, vector<16x16xf32> -> vector<16x16xf32>
    %17 = arith.addf %14, %16 : vector<16x16xf32>
    %c0_23 = arith.constant 0 : index
    %c0_24 = arith.constant 0 : index
    %18 = vector.load %arg6[%c0_23, %c0_24] : memref<16x16xf32, #tpu.memory_space<vmem>>, vector<16x16xf32>
    %cst_25 = arith.constant dense<0.000000e+00> : vector<16x16xf32>
    %19 = tpu.matmul %18, %3, %cst_25 {dimension_numbers = #tpu.dot_dimension_numbers<[1], [0], [0], [1], [0, 0, 1, 1], [], []>} : vector<16x16xf32>, vector<16x16xf32>, vector<16x16xf32> -> vector<16x16xf32>
    %c0_26 = arith.constant 0 : index
    %c0_27 = arith.constant 0 : index
    %20 = vector.load %arg7[%c0_26, %c0_27] : memref<16x16xf32, #tpu.memory_space<vmem>>, vector<16x16xf32>
    %cst_28 = arith.constant dense<0.000000e+00> : vector<16x16xf32>
    %21 = tpu.matmul %20, %3, %cst_28 {dimension_numbers = #tpu.dot_dimension_numbers<[1], [0], [0], [1], [0, 0, 1, 1], [], []>} : vector<16x16xf32>, vector<16x16xf32>, vector<16x16xf32> -> vector<16x16xf32>
    %c0_29 = arith.constant 0 : index
    %c0_30 = arith.constant 0 : index
    %22 = vector.load %arg8[%c0_29, %c0_30] : memref<16x16xf32, #tpu.memory_space<vmem>>, vector<16x16xf32>
    %cst_31 = arith.constant dense<0.000000e+00> : vector<16x16xf32>
    %23 = tpu.matmul %19, %22, %cst_31 {dimension_numbers = #tpu.dot_dimension_numbers<[1], [0], [0], [1], [0, 0, 1, 1], [], []>} : vector<16x16xf32>, vector<16x16xf32>, vector<16x16xf32> -> vector<16x16xf32>
    %c0_32 = arith.constant 0 : index
    %c0_33 = arith.constant 0 : index
    %24 = vector.load %arg9[%c0_32, %c0_33] : memref<16x16xf32, #tpu.memory_space<vmem>>, vector<16x16xf32>
    %cst_34 = arith.constant dense<0.000000e+00> : vector<16x16xf32>
    %25 = tpu.matmul %21, %24, %cst_34 {dimension_numbers = #tpu.dot_dimension_numbers<[1], [0], [0], [1], [0, 0, 1, 1], [], []>} : vector<16x16xf32>, vector<16x16xf32>, vector<16x16xf32> -> vector<16x16xf32>
    %26 = arith.subf %23, %25 : vector<16x16xf32>
    %c0_35 = arith.constant 0 : index
    %c0_36 = arith.constant 0 : index
    %27 = vector.load %arg9[%c0_35, %c0_36] : memref<16x16xf32, #tpu.memory_space<vmem>>, vector<16x16xf32>
    %cst_37 = arith.constant dense<0.000000e+00> : vector<16x16xf32>
    %28 = tpu.matmul %19, %27, %cst_37 {dimension_numbers = #tpu.dot_dimension_numbers<[1], [0], [0], [1], [0, 0, 1, 1], [], []>} : vector<16x16xf32>, vector<16x16xf32>, vector<16x16xf32> -> vector<16x16xf32>
    %c0_38 = arith.constant 0 : index
    %c0_39 = arith.constant 0 : index
    %29 = vector.load %arg8[%c0_38, %c0_39] : memref<16x16xf32, #tpu.memory_space<vmem>>, vector<16x16xf32>
    %cst_40 = arith.constant dense<0.000000e+00> : vector<16x16xf32>
    %30 = tpu.matmul %21, %29, %cst_40 {dimension_numbers = #tpu.dot_dimension_numbers<[1], [0], [0], [1], [0, 0, 1, 1], [], []>} : vector<16x16xf32>, vector<16x16xf32>, vector<16x16xf32> -> vector<16x16xf32>
    %31 = arith.addf %28, %30 : vector<16x16xf32>
    %32 = arith.mulf %26, %12 : vector<16x16xf32>
    %33 = arith.mulf %31, %17 : vector<16x16xf32>
    %34 = arith.addf %32, %33 : vector<16x16xf32>
    %c0_41 = arith.constant 0 : index
    %c0_42 = arith.constant 0 : index
    %c0_43 = arith.constant 0 : index
    %35 = vector.load %arg10[%c0_41, %c0_42, %c0_43] : memref<1x16x16xf32, #tpu.memory_space<vmem>>, vector<1x16x16xf32>
    %36 = vector.shape_cast %35 : vector<1x16x16xf32> to vector<16x16xf32>
    %37 = vector.shape_cast %34 : vector<16x16xf32> to vector<1x16x16xf32>
    tpu.vector_store %arg10[%c0_41, %c0_42, %c0_43], %37 {strides = array<i32>} : memref<1x16x16xf32, #tpu.memory_space<vmem>>, vector<1x16x16xf32>,
    %38 = arith.mulf %26, %17 : vector<16x16xf32>
    %39 = arith.mulf %31, %12 : vector<16x16xf32>
    %40 = arith.subf %38, %39 : vector<16x16xf32>
    %c0_44 = arith.constant 0 : index
    %c0_45 = arith.constant 0 : index
    %c0_46 = arith.constant 0 : index
    %41 = vector.load %arg11[%c0_44, %c0_45, %c0_46] : memref<1x16x16xf32, #tpu.memory_space<vmem>>, vector<1x16x16xf32>
    %42 = vector.shape_cast %41 : vector<1x16x16xf32> to vector<16x16xf32>
    %43 = vector.shape_cast %40 : vector<16x16xf32> to vector<1x16x16xf32>
    tpu.vector_store %arg11[%c0_44, %c0_45, %c0_46], %43 {strides = array<i32>} : memref<1x16x16xf32, #tpu.memory_space<vmem>>, vector<1x16x16xf32>,
    %44 = arith.mulf %26, %26 : vector<16x16xf32>
    %45 = arith.mulf %31, %31 : vector<16x16xf32>
    %46 = arith.addf %44, %45 : vector<16x16xf32>
    %c0_47 = arith.constant 0 : index
    %c0_48 = arith.constant 0 : index
    %c0_49 = arith.constant 0 : index
    %47 = vector.load %arg12[%c0_47, %c0_48, %c0_49] : memref<1x16x16xf32, #tpu.memory_space<vmem>>, vector<1x16x16xf32>
    %48 = vector.shape_cast %47 : vector<1x16x16xf32> to vector<16x16xf32>
    %49 = vector.shape_cast %46 : vector<16x16xf32> to vector<1x16x16xf32>
    tpu.vector_store %arg12[%c0_47, %c0_48, %c0_49], %49 {strides = array<i32>} : memref<1x16x16xf32, #tpu.memory_space<vmem>>, vector<1x16x16xf32>,
    return
  }
  func.func @transform_0(%arg0: i32) -> (i32, i32, i32, i32) {
    %c0_i32 = arith.constant 0 : i32
    %c0_i32_0 = arith.constant 0 : i32
    %c0_i32_1 = arith.constant 0 : i32
    %c0_i32_2 = arith.constant 0 : i32
    return %arg0, %c0_i32, %c0_i32_0, %c0_i32_1 : i32, i32, i32, i32
  }
  func.func @transform_1(%arg0: i32) -> (i32, i32) {
    %c0_i32 = arith.constant 0 : i32
    %c0_i32_0 = arith.constant 0 : i32
    %c0_i32_1 = arith.constant 0 : i32
    return %c0_i32, %c0_i32_0 : i32, i32
  }
  func.func @transform_2(%arg0: i32) -> (i32, i32) {
    %c0_i32 = arith.constant 0 : i32
    %c0_i32_0 = arith.constant 0 : i32
    %c0_i32_1 = arith.constant 0 : i32
    return %c0_i32, %c0_i32_0 : i32, i32
  }
  func.func @transform_3(%arg0: i32) -> (i32, i32) {
    %c0_i32 = arith.constant 0 : i32
    %c0_i32_0 = arith.constant 0 : i32
    %c0_i32_1 = arith.constant 0 : i32
    return %c0_i32, %c0_i32_0 : i32, i32
  }
  func.func @transform_4(%arg0: i32) -> (i32, i32) {
    %c0_i32 = arith.constant 0 : i32
    %c0_i32_0 = arith.constant 0 : i32
    %c0_i32_1 = arith.constant 0 : i32
    return %c0_i32, %c0_i32_0 : i32, i32
  }
  func.func @transform_5(%arg0: i32) -> (i32, i32) {
    %c0_i32 = arith.constant 0 : i32
    %c0_i32_0 = arith.constant 0 : i32
    %c0_i32_1 = arith.constant 0 : i32
    return %c0_i32, %c0_i32_0 : i32, i32
  }
  func.func @transform_6(%arg0: i32) -> (i32, i32) {
    %c0_i32 = arith.constant 0 : i32
    %c0_i32_0 = arith.constant 0 : i32
    %c0_i32_1 = arith.constant 0 : i32
    return %c0_i32, %c0_i32_0 : i32, i32
  }
  func.func @transform_7(%arg0: i32) -> (i32, i32) {
    %c0_i32 = arith.constant 0 : i32
    %c0_i32_0 = arith.constant 0 : i32
    %c0_i32_1 = arith.constant 0 : i32
    return %c0_i32, %c0_i32_0 : i32, i32
  }
  func.func @transform_8(%arg0: i32) -> (i32, i32) {
    %c0_i32 = arith.constant 0 : i32
    %c0_i32_0 = arith.constant 0 : i32
    %c0_i32_1 = arith.constant 0 : i32
    return %c0_i32, %c0_i32_0 : i32, i32
  }
  func.func @transform_9(%arg0: i32) -> (i32, i32, i32) {
    %c0_i32 = arith.constant 0 : i32
    %c0_i32_0 = arith.constant 0 : i32
    %c0_i32_1 = arith.constant 0 : i32
    return %arg0, %c0_i32, %c0_i32_0 : i32, i32, i32
  }
  func.func @transform_10(%arg0: i32) -> (i32, i32, i32) {
    %c0_i32 = arith.constant 0 : i32
    %c0_i32_0 = arith.constant 0 : i32
    %c0_i32_1 = arith.constant 0 : i32
    return %arg0, %c0_i32, %c0_i32_0 : i32, i32, i32
  }
  func.func @transform_11(%arg0: i32) -> (i32, i32, i32) {
    %c0_i32 = arith.constant 0 : i32
    %c0_i32_0 = arith.constant 0 : i32
    %c0_i32_1 = arith.constant 0 : i32
    return %arg0, %c0_i32, %c0_i32_0 : i32, i32, i32
  }
}

</mosaic_0001>

<llo_original>
// kernel: tpu_custom_call.1
$region0: #{tpu_custom_call.1}
  #allocation0 [shape = 'u32[]', space=smem, size = 0x4, offset = 0x4, fixed_abs, tag = 'smem constant byte address 0x4 - core index']
  #allocation1 [shape = 'u32[144,128]{1,0:T(1,128)}', space=vmem, size = 0x12000, scoped, tag = 'internal scratch']
  %s0 = inlined_call_operand.hbm [shape: f32[2,2,16,16], index: 0, kind: input, shape index: {}]
  %s1 = inlined_call_operand.hbm [shape: f32[16,16], index: 1, kind: input, shape index: {}]
  %s2 = inlined_call_operand.hbm [shape: f32[16,16], index: 2, kind: input, shape index: {}]
  %s3 = inlined_call_operand.hbm [shape: f32[16,16], index: 3, kind: input, shape index: {}]
  %s4 = inlined_call_operand.hbm [shape: f32[16,16], index: 4, kind: input, shape index: {}]
  %s5 = inlined_call_operand.hbm [shape: f32[16,16], index: 5, kind: input, shape index: {}]
  %s6 = inlined_call_operand.hbm [shape: f32[16,16], index: 6, kind: input, shape index: {}]
  %s7 = inlined_call_operand.hbm [shape: f32[16,16], index: 7, kind: input, shape index: {}]
  %s8 = inlined_call_operand.hbm [shape: f32[16,16], index: 8, kind: input, shape index: {}]
  %s9 = inlined_call_operand.hbm [shape: f32[2,16,16], index: 9, kind: output, shape index: {0}]
  %s10 = inlined_call_operand.hbm [shape: f32[2,16,16], index: 10, kind: output, shape index: {1}]
  %s11 = inlined_call_operand.hbm [shape: f32[2,16,16], index: 11, kind: output, shape index: {2}]
  %12 = xla_tuple %s9, %s10, %s11
  %s13 = sld [smem:[#allocation0]]
  $region121: #{tpu_custom_call.1} parent=0
    _
  %s15 = ssub.s32 1, %s13
  %s16 = scalar_select 0, %s15, %s13
  $region1: #{tpu_custom_call.1} parent=0
    #allocation2 [shape = 'u8[32768]{0}', space=vmem, size = 0x8000, scoped, tag = 'input window, operand 0']
    #allocation3 [shape = 's32[2]{0}', space=sflag, size = 0x8, scoped, tag = 'scoped memory for tpu_custom_call.1']
    #allocation4 [shape = 's32[2]{0}', space=sflag, size = 0x8, scoped, tag = 'scoped memory for tpu_custom_call.1']
    #allocation5 [shape = 'u8[8192]{0}', space=vmem, size = 0x2000, scoped, tag = 'input window, operand 1, single buffered']
    #allocation6 [shape = 's32[1]{0}', space=sflag, size = 0x4, scoped, tag = 'scoped memory for tpu_custom_call.1']
    #allocation7 [shape = 'u8[8192]{0}', space=vmem, size = 0x2000, scoped, tag = 'input window, operand 2, single buffered']
    #allocation8 [shape = 'u8[8192]{0}', space=vmem, size = 0x2000, scoped, tag = 'input window, operand 3, single buffered']
    #allocation9 [shape = 's32[1]{0}', space=sflag, size = 0x4, scoped, tag = 'scoped memory for tpu_custom_call.1']
    #allocation10 [shape = 'u8[8192]{0}', space=vmem, size = 0x2000, scoped, tag = 'input window, operand 4, single buffered']
    #allocation11 [shape = 'u8[8192]{0}', space=vmem, size = 0x2000, scoped, tag = 'input window, operand 5, single buffered']
    #allocation12 [shape = 's32[1]{0}', space=sflag, size = 0x4, scoped, tag = 'scoped memory for tpu_custom_call.1']
    #allocation13 [shape = 'u8[8192]{0}', space=vmem, size = 0x2000, scoped, tag = 'input window, operand 6, single buffered']
    #allocation14 [shape = 'u8[8192]{0}', space=vmem, size = 0x2000, scoped, tag = 'input window, operand 7, single buffered']
    #allocation15 [shape = 's32[1]{0}', space=sflag, size = 0x4, scoped, tag = 'scoped memory for tpu_custom_call.1']
    #allocation16 [shape = 'u8[8192]{0}', space=vmem, size = 0x2000, scoped, tag = 'input window, operand 8, single buffered']
    #allocation17 [shape = 'u8[16384]{0}', space=vmem, size = 0x4000, scoped, tag = 'output window, operand 0']
    #allocation18 [shape = 'u8[16384]{0}', space=vmem, size = 0x4000, scoped, tag = 'output window, operand 1']
    #allocation19 [shape = 's32[2]{0}', space=sflag, size = 0x8, scoped, tag = 'scoped memory for tpu_custom_call.1']
    #allocation20 [shape = 'u8[16384]{0}', space=vmem, size = 0x4000, scoped, tag = 'output window, operand 2']
    %17 = vsyncpa [#allocation3], 0
    %s18 = scalar_lea.sflag [#allocation3], 1
    %19 = vsyncpa %s18, 0
    %20 = vsyncpa [#allocation6], 0
    %21 = vsyncpa [#allocation9], 0
    %22 = vsyncpa [#allocation12], 0
    %23 = vsyncpa [#allocation15], 0
    %24 = vsyncpa [#allocation4], 0
    %s25 = scalar_lea.sflag [#allocation4], 1
    %26 = vsyncpa %s25, 0
    %27 = vsyncpa [#allocation19], 0
    %s28 = scalar_lea.sflag [#allocation19], 1
    %29 = vsyncpa %s28, 0
    loop: start=0, step=1, limit=4
    $region2: #{tpu_custom_call.1} parent=1 // loop_pre_header
      _
    $region3: #{tpu_custom_call.1} parent=1 // loop_header
      %s31 = sphi 0, %s35
      %p32 = scmp.ge.s32.totalorder %s31, 4
      %s41 = sphi 0, %s43
      %s44 = sphi 0, %s41
      %s45 = sphi 0, %s44
      %s61 = sphi 0, %s45
      %s65 = sphi 0, %s65
      %s67 = sphi 0, %s65
      %s68 = sphi 0, %s67
      %s82 = sphi 0, %s68
      %s86 = sphi 0, %s86
      %s88 = sphi 0, %s86
      %s89 = sphi 0, %s88
      %s103 = sphi 0, %s89
      %s107 = sphi 0, %s107
      %s109 = sphi 0, %s107
      %s110 = sphi 0, %s109
      %s124 = sphi 0, %s110
      %s128 = sphi 0, %s128
      %s130 = sphi 0, %s128
      %s131 = sphi 0, %s130
      %s145 = sphi 0, %s131
      %s149 = sphi 0, %s149
      %s151 = sphi 0, %s149
      %s152 = sphi 0, %s151
      %s166 = sphi 0, %s152
      %s170 = sphi 0, %s170
      %s172 = sphi 0, %s170
      %s173 = sphi 0, %s172
      %s187 = sphi 0, %s173
      %s191 = sphi 0, %s191
      %s193 = sphi 0, %s191
      %s194 = sphi 0, %s193
      %s208 = sphi 0, %s194
      %s212 = sphi 0, %s212
      %s214 = sphi 0, %s212
      %s215 = sphi 0, %s214
      %s229 = sphi 0, %s215
      %s235 = sphi 0, %s237
      %s238 = sphi 0, %s235
      %s239 = sphi 0, %s238
      %s255 = sphi 0, %s239
      %s261 = sphi 0, %s263
      %s264 = sphi 0, %s261
      %s265 = sphi 0, %s264
      %s281 = sphi 0, %s265
      %s287 = sphi 0, %s289
      %s290 = sphi 0, %s287
      %s291 = sphi 0, %s290
      %s307 = sphi 0, %s291
    $region4: #{tpu_custom_call.1} parent=1 // loop_header_branch
      %34 = sbr.rel (%p32) target = $region8
    $region5: #{tpu_custom_call.1} parent=1 // loop_body
      %s36 = ssub.s32 %s31, 1
      %s37 = ssub.s32 %s31, 2
      %s38 = sadd.s32 %s31, 1
      %s39 = ssub.s32 %s31, %s38
      %p40 = scmp.eq.s32.totalorder %s39, 0
      %s42 = sadd.s32 %s41, 1
      %s43 = scalar_select %p40, %s41, %s42
      %p46 = pneg %p40
      %p47 = scmp.eq.s32.totalorder %s31, 1
      %p48 = por %p46, %p47
      %p49 = scmp.ne.s32.totalorder %s41, %s44
      %p50 = scmp.eq.s32.totalorder %s31, 0
      %p51 = por %p49, %p50
      %p52 = scmp.ne.s32.totalorder %s41, %s44
      %p53 = scmp.eq.s32.totalorder %s36, 1
      %p54 = por %p52, %p53
      %p55 = scmp.ne.s32.totalorder %s44, %s45
      %p56 = scmp.eq.s32.totalorder %s36, 0
      %p57 = por %p55, %p56
      %p58 = scmp.ne.s32.totalorder %s44, %s45
      %p59 = scmp.eq.s32.totalorder %s37, 1
      %p60 = por %p58, %p59
      %p62 = scmp.ne.s32.totalorder %s45, %s61
      %p63 = scmp.eq.s32.totalorder %s37, 0
      %p64 = por %p62, %p63
      %s66 = sadd.s32 %s65, 1
      %p69 = scmp.eq.s32.totalorder %s31, 1
      %p70 = scmp.ne.s32.totalorder %s65, %s67
      %p71 = scmp.eq.s32.totalorder %s31, 0
      %p72 = por %p70, %p71
      %p73 = scmp.ne.s32.totalorder %s65, %s67
      %p74 = scmp.eq.s32.totalorder %s36, 1
      %p75 = por %p73, %p74
      %p76 = scmp.ne.s32.totalorder %s67, %s68
      %p77 = scmp.eq.s32.totalorder %s36, 0
      %p78 = por %p76, %p77
      %p79 = scmp.ne.s32.totalorder %s67, %s68
      %p80 = scmp.eq.s32.totalorder %s37, 1
      %p81 = por %p79, %p80
      %p83 = scmp.ne.s32.totalorder %s68, %s82
      %p84 = scmp.eq.s32.totalorder %s37, 0
      %p85 = por %p83, %p84
      %s87 = sadd.s32 %s86, 1
      %p90 = scmp.eq.s32.totalorder %s31, 1
      %p91 = scmp.ne.s32.totalorder %s86, %s88
      %p92 = scmp.eq.s32.totalorder %s31, 0
      %p93 = por %p91, %p92
      %p94 = scmp.ne.s32.totalorder %s86, %s88
      %p95 = scmp.eq.s32.totalorder %s36, 1
      %p96 = por %p94, %p95
      %p97 = scmp.ne.s32.totalorder %s88, %s89
      %p98 = scmp.eq.s32.totalorder %s36, 0
      %p99 = por %p97, %p98
      %p100 = scmp.ne.s32.totalorder %s88, %s89
      %p101 = scmp.eq.s32.totalorder %s37, 1
      %p102 = por %p100, %p101
      %p104 = scmp.ne.s32.totalorder %s89, %s103
      %p105 = scmp.eq.s32.totalorder %s37, 0
      %p106 = por %p104, %p105
      %s108 = sadd.s32 %s107, 1
      %p111 = scmp.eq.s32.totalorder %s31, 1
      %p112 = scmp.ne.s32.totalorder %s107, %s109
      %p113 = scmp.eq.s32.totalorder %s31, 0
      %p114 = por %p112, %p113
      %p115 = scmp.ne.s32.totalorder %s107, %s109
      %p116 = scmp.eq.s32.totalorder %s36, 1
      %p117 = por %p115, %p116
      %p118 = scmp.ne.s32.totalorder %s109, %s110
      %p119 = scmp.eq.s32.totalorder %s36, 0
      %p120 = por %p118, %p119
      %p121 = scmp.ne.s32.totalorder %s109, %s110
      %p122 = scmp.eq.s32.totalorder %s37, 1
      %p123 = por %p121, %p122
      %p125 = scmp.ne.s32.totalorder %s110, %s124
      %p126 = scmp.eq.s32.totalorder %s37, 0
      %p127 = por %p125, %p126
      %s129 = sadd.s32 %s128, 1
      %p132 = scmp.eq.s32.totalorder %s31, 1
      %p133 = scmp.ne.s32.totalorder %s128, %s130
      %p134 = scmp.eq.s32.totalorder %s31, 0
      %p135 = por %p133, %p134
      %p136 = scmp.ne.s32.totalorder %s128, %s130
      %p137 = scmp.eq.s32.totalorder %s36, 1
      %p138 = por %p136, %p137
      %p139 = scmp.ne.s32.totalorder %s130, %s131
      %p140 = scmp.eq.s32.totalorder %s36, 0
      %p141 = por %p139, %p140
      %p142 = scmp.ne.s32.totalorder %s130, %s131
      %p143 = scmp.eq.s32.totalorder %s37, 1
      %p144 = por %p142, %p143
      %p146 = scmp.ne.s32.totalorder %s131, %s145
      %p147 = scmp.eq.s32.totalorder %s37, 0
      %p148 = por %p146, %p147
      %s150 = sadd.s32 %s149, 1
      %p153 = scmp.eq.s32.totalorder %s31, 1
      %p154 = scmp.ne.s32.totalorder %s149, %s151
      %p155 = scmp.eq.s32.totalorder %s31, 0
      %p156 = por %p154, %p155
      %p157 = scmp.ne.s32.totalorder %s149, %s151
      %p158 = scmp.eq.s32.totalorder %s36, 1
      %p159 = por %p157, %p158
      %p160 = scmp.ne.s32.totalorder %s151, %s152
      %p161 = scmp.eq.s32.totalorder %s36, 0
      %p162 = por %p160, %p161
      %p163 = scmp.ne.s32.totalorder %s151, %s152
      %p164 = scmp.eq.s32.totalorder %s37, 1
      %p165 = por %p163, %p164
      %p167 = scmp.ne.s32.totalorder %s152, %s166
      %p168 = scmp.eq.s32.totalorder %s37, 0
      %p169 = por %p167, %p168
      %s171 = sadd.s32 %s170, 1
      %p174 = scmp.eq.s32.totalorder %s31, 1
      %p175 = scmp.ne.s32.totalorder %s170, %s172
      %p176 = scmp.eq.s32.totalorder %s31, 0
      %p177 = por %p175, %p176
      %p178 = scmp.ne.s32.totalorder %s170, %s172
      %p179 = scmp.eq.s32.totalorder %s36, 1
      %p180 = por %p178, %p179
      %p181 = scmp.ne.s32.totalorder %s172, %s173
      %p182 = scmp.eq.s32.totalorder %s36, 0
      %p183 = por %p181, %p182
      %p184 = scmp.ne.s32.totalorder %s172, %s173
      %p185 = scmp.eq.s32.totalorder %s37, 1
      %p186 = por %p184, %p185
      %p188 = scmp.ne.s32.totalorder %s173, %s187
      %p189 = scmp.eq.s32.totalorder %s37, 0
      %p190 = por %p188, %p189
      %s192 = sadd.s32 %s191, 1
      %p195 = scmp.eq.s32.totalorder %s31, 1
      %p196 = scmp.ne.s32.totalorder %s191, %s193
      %p197 = scmp.eq.s32.totalorder %s31, 0
      %p198 = por %p196, %p197
      %p199 = scmp.ne.s32.totalorder %s191, %s193
      %p200 = scmp.eq.s32.totalorder %s36, 1
      %p201 = por %p199, %p200
      %p202 = scmp.ne.s32.totalorder %s193, %s194
      %p203 = scmp.eq.s32.totalorder %s36, 0
      %p204 = por %p202, %p203
      %p205 = scmp.ne.s32.totalorder %s193, %s194
      %p206 = scmp.eq.s32.totalorder %s37, 1
      %p207 = por %p205, %p206
      %p209 = scmp.ne.s32.totalorder %s194, %s208
      %p210 = scmp.eq.s32.totalorder %s37, 0
      %p211 = por %p209, %p210
      %s213 = sadd.s32 %s212, 1
      %p216 = scmp.eq.s32.totalorder %s31, 1
      %p217 = scmp.ne.s32.totalorder %s212, %s214
      %p218 = scmp.eq.s32.totalorder %s31, 0
      %p219 = por %p217, %p218
      %p220 = scmp.ne.s32.totalorder %s212, %s214
      %p221 = scmp.eq.s32.totalorder %s36, 1
      %p222 = por %p220, %p221
      %p223 = scmp.ne.s32.totalorder %s214, %s215
      %p224 = scmp.eq.s32.totalorder %s36, 0
      %p225 = por %p223, %p224
      %p226 = scmp.ne.s32.totalorder %s214, %s215
      %p227 = scmp.eq.s32.totalorder %s37, 1
      %p228 = por %p226, %p227
      %p230 = scmp.ne.s32.totalorder %s215, %s229
      %p231 = scmp.eq.s32.totalorder %s37, 0
      %p232 = por %p230, %p231
      %s233 = ssub.s32 %s31, %s38
      %p234 = scmp.eq.s32.totalorder %s233, 0
      %s236 = sadd.s32 %s235, 1
      %s237 = scalar_select %p234, %s235, %s236
      %p240 = pneg %p234
      %p241 = scmp.eq.s32.totalorder %s31, 1
      %p242 = por %p240, %p241
      %p243 = scmp.ne.s32.totalorder %s235, %s238
      %p244 = scmp.eq.s32.totalorder %s31, 0
      %p245 = por %p243, %p244
      %p246 = scmp.ne.s32.totalorder %s235, %s238
      %p247 = scmp.eq.s32.totalorder %s36, 1
      %p248 = por %p246, %p247
      %p249 = scmp.ne.s32.totalorder %s238, %s239
      %p250 = scmp.eq.s32.totalorder %s36, 0
      %p251 = por %p249, %p250
      %p252 = scmp.ne.s32.totalorder %s238, %s239
      %p253 = scmp.eq.s32.totalorder %s37, 1
      %p254 = por %p252, %p253
      %p256 = scmp.ne.s32.totalorder %s239, %s255
      %p257 = scmp.eq.s32.totalorder %s37, 0
      %p258 = por %p256, %p257
      %s259 = ssub.s32 %s31, %s38
      %p260 = scmp.eq.s32.totalorder %s259, 0
      %s262 = sadd.s32 %s261, 1
      %s263 = scalar_select %p260, %s261, %s262
      %p266 = pneg %p260
      %p267 = scmp.eq.s32.totalorder %s31, 1
      %p268 = por %p266, %p267
      %p269 = scmp.ne.s32.totalorder %s261, %s264
      %p270 = scmp.eq.s32.totalorder %s31, 0
      %p271 = por %p269, %p270
      %p272 = scmp.ne.s32.totalorder %s261, %s264
      %p273 = scmp.eq.s32.totalorder %s36, 1
      %p274 = por %p272, %p273
      %p275 = scmp.ne.s32.totalorder %s264, %s265
      %p276 = scmp.eq.s32.totalorder %s36, 0
      %p277 = por %p275, %p276
      %p278 = scmp.ne.s32.totalorder %s264, %s265
      %p279 = scmp.eq.s32.totalorder %s37, 1
      %p280 = por %p278, %p279
      %p282 = scmp.ne.s32.totalorder %s265, %s281
      %p283 = scmp.eq.s32.totalorder %s37, 0
      %p284 = por %p282, %p283
      %s285 = ssub.s32 %s31, %s38
      %p286 = scmp.eq.s32.totalorder %s285, 0
      %s288 = sadd.s32 %s287, 1
      %s289 = scalar_select %p286, %s287, %s288
      %p292 = pneg %p286
      %p293 = scmp.eq.s32.totalorder %s31, 1
      %p294 = por %p292, %p293
      %p295 = scmp.ne.s32.totalorder %s287, %s290
      %p296 = scmp.eq.s32.totalorder %s31, 0
      %p297 = por %p295, %p296
      %p298 = scmp.ne.s32.totalorder %s287, %s290
      %p299 = scmp.eq.s32.totalorder %s36, 1
      %p300 = por %p298, %p299
      %p301 = scmp.ne.s32.totalorder %s290, %s291
      %p302 = scmp.eq.s32.totalorder %s36, 0
      %p303 = por %p301, %p302
      %p304 = scmp.ne.s32.totalorder %s290, %s291
      %p305 = scmp.eq.s32.totalorder %s37, 1
      %p306 = por %p304, %p305
      %p308 = scmp.ne.s32.totalorder %s291, %s307
      %p309 = scmp.eq.s32.totalorder %s37, 0
      %p310 = por %p308, %p309
      %p311 = scmp.le.s32.totalorder 1, %s31
      %p312 = scmp.lt.s32.totalorder %s31, 3
      %p313 = pnand %p311, %p312
      %p314 = pneg %p313
      // Predicated region
      $region9: #{tpu_custom_call.1} parent=5 // pred_check
        _
      $region10: #{tpu_custom_call.1} parent=5 // pred_check_branch
        %316 = sbr.rel (%p313) target = $region12
      $region11: #{tpu_custom_call.1} parent=5 // pred_region
        %s317 = ssub.s32 %s31, 1
        // Predicated region
        $region13: #{tpu_custom_call.1} parent=11 // pred_check
          %p318 = pneg %p78
        $region14: #{tpu_custom_call.1} parent=11 // pred_check_branch
          %320 = sbr.rel (%p318) target = $region16
        $region15: #{tpu_custom_call.1} parent=11 // pred_region
          %s322 = ssub.s32 256, 256
          %323 = vsyncadd [#allocation6], %s322
          %s324 = sshll.u32 [#allocation5], 4
          %s325 = int_to_ptr.vmem [resolvable:$true] %s324
          %330 = dma.hbm_to_vmem [thread:$0]  %s1, 256, %s325, [#allocation6], 128, 128, 8
        $region16: #{tpu_custom_call.1} parent=11 // pred_fallthru
          _
        // Predicated region
        $region17: #{tpu_custom_call.1} parent=11 // pred_check
          %p331 = pneg %p99
        $region18: #{tpu_custom_call.1} parent=11 // pred_check_branch
          %333 = sbr.rel (%p331) target = $region20
        $region19: #{tpu_custom_call.1} parent=11 // pred_region
          %s335 = ssub.s32 256, 256
          %336 = vsyncadd [#allocation6], %s335
          %s337 = sshll.u32 [#allocation7], 4
          %s338 = int_to_ptr.vmem [resolvable:$true] %s337
          %343 = dma.hbm_to_vmem [thread:$0]  %s2, 256, %s338, [#allocation6], 128, 128, 8
        $region20: #{tpu_custom_call.1} parent=11 // pred_fallthru
          _
        // Predicated region
        $region21: #{tpu_custom_call.1} parent=11 // pred_check
          %p344 = pneg %p120
        $region22: #{tpu_custom_call.1} parent=11 // pred_check_branch
          %346 = sbr.rel (%p344) target = $region24
        $region23: #{tpu_custom_call.1} parent=11 // pred_region
          %s348 = ssub.s32 256, 256
          %349 = vsyncadd [#allocation9], %s348
          %s350 = sshll.u32 [#allocation8], 4
          %s351 = int_to_ptr.vmem [resolvable:$true] %s350
          %356 = dma.hbm_to_vmem [thread:$0]  %s3, 256, %s351, [#allocation9], 128, 128, 8
        $region24: #{tpu_custom_call.1} parent=11 // pred_fallthru
          _
        // Predicated region
        $region25: #{tpu_custom_call.1} parent=11 // pred_check
          %p357 = pneg %p141
        $region26: #{tpu_custom_call.1} parent=11 // pred_check_branch
          %359 = sbr.rel (%p357) target = $region28
        $region27: #{tpu_custom_call.1} parent=11 // pred_region
          %s361 = ssub.s32 256, 256
          %362 = vsyncadd [#allocation9], %s361
          %s363 = sshll.u32 [#allocation10], 4
          %s364 = int_to_ptr.vmem [resolvable:$true] %s363
          %369 = dma.hbm_to_vmem [thread:$0]  %s4, 256, %s364, [#allocation9], 128, 128, 8
        $region28: #{tpu_custom_call.1} parent=11 // pred_fallthru
          _
        // Predicated region
        $region29: #{tpu_custom_call.1} parent=11 // pred_check
          %p370 = pneg %p162
        $region30: #{tpu_custom_call.1} parent=11 // pred_check_branch
          %372 = sbr.rel (%p370) target = $region32
        $region31: #{tpu_custom_call.1} parent=11 // pred_region
          %s374 = ssub.s32 256, 256
          %375 = vsyncadd [#allocation12], %s374
          %s376 = sshll.u32 [#allocation11], 4
          %s377 = int_to_ptr.vmem [resolvable:$true] %s376
          %382 = dma.hbm_to_vmem [thread:$0]  %s5, 256, %s377, [#allocation12], 128, 128, 8
        $region32: #{tpu_custom_call.1} parent=11 // pred_fallthru
          _
        // Predicated region
        $region33: #{tpu_custom_call.1} parent=11 // pred_check
          %p383 = pneg %p183
        $region34: #{tpu_custom_call.1} parent=11 // pred_check_branch
          %385 = sbr.rel (%p383) target = $region36
        $region35: #{tpu_custom_call.1} parent=11 // pred_region
          %s387 = ssub.s32 256, 256
          %388 = vsyncadd [#allocation12], %s387
          %s389 = sshll.u32 [#allocation13], 4
          %s390 = int_to_ptr.vmem [resolvable:$true] %s389
          %395 = dma.hbm_to_vmem [thread:$0]  %s6, 256, %s390, [#allocation12], 128, 128, 8
        $region36: #{tpu_custom_call.1} parent=11 // pred_fallthru
          _
        // Predicated region
        $region37: #{tpu_custom_call.1} parent=11 // pred_check
          %p396 = pneg %p204
        $region38: #{tpu_custom_call.1} parent=11 // pred_check_branch
          %398 = sbr.rel (%p396) target = $region40
        $region39: #{tpu_custom_call.1} parent=11 // pred_region
          %s400 = ssub.s32 256, 256
          %401 = vsyncadd [#allocation15], %s400
          %s402 = sshll.u32 [#allocation14], 4
          %s403 = int_to_ptr.vmem [resolvable:$true] %s402
          %408 = dma.hbm_to_vmem [thread:$0]  %s7, 256, %s403, [#allocation15], 128, 128, 8
        $region40: #{tpu_custom_call.1} parent=11 // pred_fallthru
          _
        // Predicated region
        $region41: #{tpu_custom_call.1} parent=11 // pred_check
          %p409 = pneg %p225
        $region42: #{tpu_custom_call.1} parent=11 // pred_check_branch
          %411 = sbr.rel (%p409) target = $region44
        $region43: #{tpu_custom_call.1} parent=11 // pred_region
          %s413 = ssub.s32 256, 256
          %414 = vsyncadd [#allocation15], %s413
          %s415 = sshll.u32 [#allocation16], 4
          %s416 = int_to_ptr.vmem [resolvable:$true] %s415
          %421 = dma.hbm_to_vmem [thread:$0]  %s8, 256, %s416, [#allocation15], 128, 128, 8
        $region44: #{tpu_custom_call.1} parent=11 // pred_fallthru
          _
      $region12: #{tpu_custom_call.1} parent=5 // pred_fallthru
        _
      %p422 = scmp.lt.s32.totalorder %s31, 2
      // Predicated region
      $region45: #{tpu_custom_call.1} parent=5 // pred_check
        %p423 = pneg %p422
      $region46: #{tpu_custom_call.1} parent=5 // pred_check_branch
        %425 = sbr.rel (%p423) target = $region48
      $region47: #{tpu_custom_call.1} parent=5 // pred_region
        // Predicated region
        $region49: #{tpu_custom_call.1} parent=47 // pred_check
          %p426 = pneg %p51
        $region50: #{tpu_custom_call.1} parent=47 // pred_check_branch
          %428 = sbr.rel (%p426) target = $region52
        $region51: #{tpu_custom_call.1} parent=47 // pred_region
          %s429 = sand.u32 %s41, 1
          %s430 = scalar_lea.sflag [#allocation3], %s429
          %s431 = sand.u32 %s41, 1
          %s432 = smul.addr %s431, 32
          %s433 = scalar_lea.vmem [#allocation2], %s432
          %s435 = ssub.s32 512, 512
          %436 = vsyncadd %s430, %s435
          %s437 = smul.addr %s31, 4
          %s438 = smul.addr %s437, 128
          %s439 = scalar_lea.hbm %s0, %s438
          %s440 = sshll.u32 %s433, 4
          %s441 = int_to_ptr.vmem [resolvable:$true] %s440
          %446 = dma.hbm_to_vmem [thread:$0]  %s439, 512, %s441, %s430, 128, 128, 8
        $region52: #{tpu_custom_call.1} parent=47 // pred_fallthru
          _
      $region48: #{tpu_custom_call.1} parent=5 // pred_fallthru
        _
      %p447 = scmp.le.s32.totalorder 1, %s31
      %p448 = scmp.lt.s32.totalorder %s31, 3
      %p449 = pnand %p447, %p448
      %p450 = pneg %p449
      // Predicated region
      $region53: #{tpu_custom_call.1} parent=5 // pred_check
        _
      $region54: #{tpu_custom_call.1} parent=5 // pred_check_branch
        %452 = sbr.rel (%p449) target = $region56
      $region55: #{tpu_custom_call.1} parent=5 // pred_region
        %s453 = ssub.s32 %s31, 1
        %s454 = sand.u32 %s44, 1
        %s455 = scalar_lea.sflag [#allocation3], %s454
        %s456 = sand.u32 %s44, 1
        %s457 = smul.addr %s456, 32
        %s458 = scalar_lea.vmem [#allocation2], %s457
        // Predicated region
        $region57: #{tpu_custom_call.1} parent=55 // pred_check
          %p459 = pneg %p57
        $region58: #{tpu_custom_call.1} parent=55 // pred_check_branch
          %461 = sbr.rel (%p459) target = $region60
        $region59: #{tpu_custom_call.1} parent=55 // pred_region
          %462 = dma.done %s455, 512
        $region60: #{tpu_custom_call.1} parent=55 // pred_fallthru
          _
        // Predicated region
        $region61: #{tpu_custom_call.1} parent=55 // pred_check
          %p463 = pneg %p78
        $region62: #{tpu_custom_call.1} parent=55 // pred_check_branch
          %465 = sbr.rel (%p463) target = $region64
        $region63: #{tpu_custom_call.1} parent=55 // pred_region
          %466 = dma.done [#allocation6], 256
        $region64: #{tpu_custom_call.1} parent=55 // pred_fallthru
          _
        // Predicated region
        $region65: #{tpu_custom_call.1} parent=55 // pred_check
          %p467 = pneg %p99
        $region66: #{tpu_custom_call.1} parent=55 // pred_check_branch
          %469 = sbr.rel (%p467) target = $region68
        $region67: #{tpu_custom_call.1} parent=55 // pred_region
          %470 = dma.done [#allocation6], 256
        $region68: #{tpu_custom_call.1} parent=55 // pred_fallthru
          _
        // Predicated region
        $region69: #{tpu_custom_call.1} parent=55 // pred_check
          %p471 = pneg %p120
        $region70: #{tpu_custom_call.1} parent=55 // pred_check_branch
          %473 = sbr.rel (%p471) target = $region72
        $region71: #{tpu_custom_call.1} parent=55 // pred_region
          %474 = dma.done [#allocation9], 256
        $region72: #{tpu_custom_call.1} parent=55 // pred_fallthru
          _
        // Predicated region
        $region73: #{tpu_custom_call.1} parent=55 // pred_check
          %p475 = pneg %p141
        $region74: #{tpu_custom_call.1} parent=55 // pred_check_branch
          %477 = sbr.rel (%p475) target = $region76
        $region75: #{tpu_custom_call.1} parent=55 // pred_region
          %478 = dma.done [#allocation9], 256
        $region76: #{tpu_custom_call.1} parent=55 // pred_fallthru
          _
        // Predicated region
        $region77: #{tpu_custom_call.1} parent=55 // pred_check
          %p479 = pneg %p162
        $region78: #{tpu_custom_call.1} parent=55 // pred_check_branch
          %481 = sbr.rel (%p479) target = $region80
        $region79: #{tpu_custom_call.1} parent=55 // pred_region
          %482 = dma.done [#allocation12], 256
        $region80: #{tpu_custom_call.1} parent=55 // pred_fallthru
          _
        // Predicated region
        $region81: #{tpu_custom_call.1} parent=55 // pred_check
          %p483 = pneg %p183
        $region82: #{tpu_custom_call.1} parent=55 // pred_check_branch
          %485 = sbr.rel (%p483) target = $region84
        $region83: #{tpu_custom_call.1} parent=55 // pred_region
          %486 = dma.done [#allocation12], 256
        $region84: #{tpu_custom_call.1} parent=55 // pred_fallthru
          _
        // Predicated region
        $region85: #{tpu_custom_call.1} parent=55 // pred_check
          %p487 = pneg %p204
        $region86: #{tpu_custom_call.1} parent=55 // pred_check_branch
          %489 = sbr.rel (%p487) target = $region88
        $region87: #{tpu_custom_call.1} parent=55 // pred_region
          %490 = dma.done [#allocation15], 256
        $region88: #{tpu_custom_call.1} parent=55 // pred_fallthru
          _
        // Predicated region
        $region89: #{tpu_custom_call.1} parent=55 // pred_check
          %p491 = pneg %p225
        $region90: #{tpu_custom_call.1} parent=55 // pred_check_branch
          %493 = sbr.rel (%p491) target = $region92
        $region91: #{tpu_custom_call.1} parent=55 // pred_region
          %494 = dma.done [#allocation15], 256
        $region92: #{tpu_custom_call.1} parent=55 // pred_fallthru
          _
        %s495 = sand.u32 %s44, 1
        %s496 = scalar_lea.sflag [#allocation3], %s495
        %s497 = sand.u32 %s44, 1
        %s498 = smul.addr %s497, 32
        %s499 = scalar_lea.vmem [#allocation2], %s498
        %p500 = pneg %p57
        %p501 = pneg %p54
        %p502 = pneg %p78
        %p503 = pneg %p75
        %p504 = pneg %p99
        %p505 = pneg %p96
        %p506 = pneg %p120
        %p507 = pneg %p117
        %p508 = pneg %p141
        %p509 = pneg %p138
        %p510 = pneg %p162
        %p511 = pneg %p159
        %p512 = pneg %p183
        %p513 = pneg %p180
        %p514 = pneg %p204
        %p515 = pneg %p201
        %p516 = pneg %p225
        %p517 = pneg %p222
        %p518 = pneg %p251
        %p519 = pneg %p248
        %s520 = sand.u32 %s238, 1
        %s521 = scalar_lea.sflag [#allocation4], %s520
        %s522 = sand.u32 %s238, 1
        %s523 = smul.addr %s522, 16
        %s524 = scalar_lea.vmem [#allocation17], %s523
        %p525 = pneg %p277
        %p526 = pneg %p274
        %s527 = sand.u32 %s36, 1
        %s528 = scalar_lea.sflag [#allocation19], %s527
        %s529 = sand.u32 %s264, 1
        %s530 = smul.addr %s529, 16
        %s531 = scalar_lea.vmem [#allocation18], %s530
        %p532 = pneg %p303
        %p533 = pneg %p300
        %s534 = sand.u32 %s36, 1
        %s535 = scalar_lea.sflag [#allocation19], %s534
        %s536 = sand.u32 %s290, 1
        %s537 = smul.addr %s536, 16
        %s538 = scalar_lea.vmem [#allocation20], %s537
        %v539 = vld [vmem:[%s458] sm:$0xff]
        %v540 = vld [vmem:[%s458 + $0x8] sm:$0xff]
        %s541 = scalar_lea.vmem %s458, 16 [#allocation2]
        %v542 = vld [vmem:[%s541] sm:$0xff]
        %v543 = vld [vmem:[%s541 + $0x8] sm:$0xff]
        %v544 = vld [vmem:[#allocation5] sm:$0xff]
        %v545 = vld [vmem:[#allocation5 + $0x8] sm:$0xff]
        %vm546 = vcmask 130048
        %v548 = vsel %vm546, %v544, 0
        %v551 = vsel %vm546, %v545, 0
        %553 = vmatprep.subr.mxu0 0.0
        %554 = vmatpush1.msra.mxu0 0.0
        %555 = vmatprep.subr.mxu0 0.0
        %556 = vmatpush1.msra.mxu0 0.0
        %557 = vmatprep.subr.mxu0 0.0
        %558 = vmatpush1.msra.mxu0 0.0
        %559 = vmatprep.subr.mxu0 0.0
        %560 = vmatpush1.msra.mxu0 0.0
        %561 = vmatprep.subr.mxu0 0.0
        %562 = vmatpush1.msra.mxu0 0.0
        %563 = vmatprep.subr.mxu0 0.0
        %564 = vmatpush1.msra.mxu0 0.0
        %565 = vmatprep.subr.mxu0 0.0
        %566 = vmatpush1.msra.mxu0 0.0
        %567 = vmatprep.subr.mxu0 0.0
        %568 = vmatpush1.msra.mxu0 0.0
        %569 = vmatprep.subr.mxu0 0.0
        %570 = vmatpush1.msra.mxu0 0.0
        %571 = vmatprep.subr.mxu0 0.0
        %572 = vmatpush1.msra.mxu0 0.0
        %573 = vmatprep.subr.mxu0 0.0
        %574 = vmatpush1.msra.mxu0 0.0
        %575 = vmatprep.subr.mxu0 0.0
        %576 = vmatpush1.msra.mxu0 0.0
        %577 = vmatprep.subr.mxu0 0.0
        %578 = vmatpush1.msra.mxu0 0.0
        %579 = vmatprep.subr.mxu0 0.0
        %580 = vmatpush1.msra.mxu0 0.0
        %581 = vmatprep.subr.mxu0 0.0
        %582 = vmatpush1.msra.mxu0 %v540
        %583 = vmatprep.subr.mxu0 0.0
        %584 = vmatpush1.msra.mxu0 %v539
        %585 = vmatprep.subr.mxu0 0.0
        %586 = vmatpush2.msra.mxu0 0.0
        %587 = vmatprep.subr.mxu0 0.0
        %588 = vmatpush2.msra.mxu0 0.0
        %589 = vmatprep.subr.mxu0 0.0
        %590 = vmatpush2.msra.mxu0 0.0
        %591 = vmatprep.subr.mxu0 0.0
        %592 = vmatpush2.msra.mxu0 0.0
        %593 = vmatprep.subr.mxu0 0.0
        %594 = vmatpush2.msra.mxu0 0.0
        %595 = vmatprep.subr.mxu0 0.0
        %596 = vmatpush2.msra.mxu0 0.0
        %597 = vmatprep.subr.mxu0 0.0
        %598 = vmatpush2.msra.mxu0 0.0
        %599 = vmatprep.subr.mxu0 0.0
        %600 = vmatpush2.msra.mxu0 0.0
        %601 = vmatprep.subr.mxu0 0.0
        %602 = vmatpush2.msra.mxu0 0.0
        %603 = vmatprep.subr.mxu0 0.0
        %604 = vmatpush2.msra.mxu0 0.0
        %605 = vmatprep.subr.mxu0 0.0
        %606 = vmatpush2.msra.mxu0 0.0
        %607 = vmatprep.subr.mxu0 0.0
        %608 = vmatpush2.msra.mxu0 0.0
        %609 = vmatprep.subr.mxu0 0.0
        %610 = vmatpush2.msra.mxu0 0.0
        %611 = vmatprep.subr.mxu0 0.0
        %612 = vmatpush2.msra.mxu0 0.0
        %613 = vmatprep.subr.mxu0 0.0
        %614 = vmatpush2.msra.mxu0 0.0
        %615 = vmatprep.subr.mxu0 0.0
        %616 = vmatpush2.msra.mxu0 0.0
        %617 = vmatprep.mubr.f32.mxu0 0.0
        %618 = vmatmul.mubr.f32.gmra.mxu0 %v548
        %v619 = vpop.f32.mrf.mxu0
        %v620 = vadd.f32 0.0, %v619
        %v621 = vpop.f32.mrf.mxu0
        %622 = vmatprep.mubr.f32.mxu0 0.0
        %623 = vmatmul.mubr.f32.gmra.mxu0 %v551
        %v624 = vpop.f32.mrf.mxu0
        %v625 = vadd.f32 0.0, %v624
        %v626 = vpop.f32.mrf.mxu0
        %627 = vdwg.mxu0
        %v628 = vld [vmem:[#allocation7] sm:$0xff]
        %v629 = vld [vmem:[#allocation7 + $0x8] sm:$0xff]
        %v631 = vsel %vm546, %v628, 0
        %v634 = vsel %vm546, %v629, 0
        %636 = vmatprep.subr.mxu0 0.0
        %637 = vmatpush1.msra.mxu0 0.0
        %638 = vmatprep.subr.mxu0 0.0
        %639 = vmatpush1.msra.mxu0 0.0
        %640 = vmatprep.subr.mxu0 0.0
        %641 = vmatpush1.msra.mxu0 0.0
        %642 = vmatprep.subr.mxu0 0.0
        %643 = vmatpush1.msra.mxu0 0.0
        %644 = vmatprep.subr.mxu0 0.0
        %645 = vmatpush1.msra.mxu0 0.0
        %646 = vmatprep.subr.mxu0 0.0
        %647 = vmatpush1.msra.mxu0 0.0
        %648 = vmatprep.subr.mxu0 0.0
        %649 = vmatpush1.msra.mxu0 0.0
        %650 = vmatprep.subr.mxu0 0.0
        %651 = vmatpush1.msra.mxu0 0.0
        %652 = vmatprep.subr.mxu0 0.0
        %653 = vmatpush1.msra.mxu0 0.0
        %654 = vmatprep.subr.mxu0 0.0
        %655 = vmatpush1.msra.mxu0 0.0
        %656 = vmatprep.subr.mxu0 0.0
        %657 = vmatpush1.msra.mxu0 0.0
        %658 = vmatprep.subr.mxu0 0.0
        %659 = vmatpush1.msra.mxu0 0.0
        %660 = vmatprep.subr.mxu0 0.0
        %661 = vmatpush1.msra.mxu0 0.0
        %662 = vmatprep.subr.mxu0 0.0
        %663 = vmatpush1.msra.mxu0 0.0
        %664 = vmatprep.subr.mxu0 0.0
        %665 = vmatpush1.msra.mxu0 %v540
        %666 = vmatprep.subr.mxu0 0.0
        %667 = vmatpush1.msra.mxu0 %v539
        %668 = vmatprep.subr.mxu0 0.0
        %669 = vmatpush2.msra.mxu0 0.0
        %670 = vmatprep.subr.mxu0 0.0
        %671 = vmatpush2.msra.mxu0 0.0
        %672 = vmatprep.subr.mxu0 0.0
        %673 = vmatpush2.msra.mxu0 0.0
        %674 = vmatprep.subr.mxu0 0.0
        %675 = vmatpush2.msra.mxu0 0.0
        %676 = vmatprep.subr.mxu0 0.0
        %677 = vmatpush2.msra.mxu0 0.0
        %678 = vmatprep.subr.mxu0 0.0
        %679 = vmatpush2.msra.mxu0 0.0
        %680 = vmatprep.subr.mxu0 0.0
        %681 = vmatpush2.msra.mxu0 0.0
        %682 = vmatprep.subr.mxu0 0.0
        %683 = vmatpush2.msra.mxu0 0.0
        %684 = vmatprep.subr.mxu0 0.0
        %685 = vmatpush2.msra.mxu0 0.0
        %686 = vmatprep.subr.mxu0 0.0
        %687 = vmatpush2.msra.mxu0 0.0
        %688 = vmatprep.subr.mxu0 0.0
        %689 = vmatpush2.msra.mxu0 0.0
        %690 = vmatprep.subr.mxu0 0.0
        %691 = vmatpush2.msra.mxu0 0.0
        %692 = vmatprep.subr.mxu0 0.0
        %693 = vmatpush2.msra.mxu0 0.0
        %694 = vmatprep.subr.mxu0 0.0
        %695 = vmatpush2.msra.mxu0 0.0
        %696 = vmatprep.subr.mxu0 0.0
        %697 = vmatpush2.msra.mxu0 0.0
        %698 = vmatprep.subr.mxu0 0.0
        %699 = vmatpush2.msra.mxu0 0.0
        %700 = vmatprep.mubr.f32.mxu0 0.0
        %701 = vmatmul.mubr.f32.gmra.mxu0 %v631
        %v702 = vpop.f32.mrf.mxu0
        %v703 = vadd.f32 0.0, %v702
        %v704 = vpop.f32.mrf.mxu0
        %705 = vmatprep.mubr.f32.mxu0 0.0
        %706 = vmatmul.mubr.f32.gmra.mxu0 %v634
        %v707 = vpop.f32.mrf.mxu0
        %v708 = vadd.f32 0.0, %v707
        %v709 = vpop.f32.mrf.mxu0
        %710 = vdwg.mxu0
        %v711 = vld [vmem:[#allocation8] sm:$0xff]
        %v712 = vld [vmem:[#allocation8 + $0x8] sm:$0xff]
        %v714 = vsel %vm546, %v620, 0
        %v717 = vsel %vm546, %v625, 0
        %719 = vmatprep.subr.mxu0 0.0
        %720 = vmatpush1.msra.mxu0 0.0
        %721 = vmatprep.subr.mxu0 0.0
        %722 = vmatpush1.msra.mxu0 0.0
        %723 = vmatprep.subr.mxu0 0.0
        %724 = vmatpush1.msra.mxu0 0.0
        %725 = vmatprep.subr.mxu0 0.0
        %726 = vmatpush1.msra.mxu0 0.0
        %727 = vmatprep.subr.mxu0 0.0
        %728 = vmatpush1.msra.mxu0 0.0
        %729 = vmatprep.subr.mxu0 0.0
        %730 = vmatpush1.msra.mxu0 0.0
        %731 = vmatprep.subr.mxu0 0.0
        %732 = vmatpush1.msra.mxu0 0.0
        %733 = vmatprep.subr.mxu0 0.0
        %734 = vmatpush1.msra.mxu0 0.0
        %735 = vmatprep.subr.mxu0 0.0
        %736 = vmatpush1.msra.mxu0 0.0
        %737 = vmatprep.subr.mxu0 0.0
        %738 = vmatpush1.msra.mxu0 0.0
        %739 = vmatprep.subr.mxu0 0.0
        %740 = vmatpush1.msra.mxu0 0.0
        %741 = vmatprep.subr.mxu0 0.0
        %742 = vmatpush1.msra.mxu0 0.0
        %743 = vmatprep.subr.mxu0 0.0
        %744 = vmatpush1.msra.mxu0 0.0
        %745 = vmatprep.subr.mxu0 0.0
        %746 = vmatpush1.msra.mxu0 0.0
        %747 = vmatprep.subr.mxu0 0.0
        %748 = vmatpush1.msra.mxu0 %v712
        %749 = vmatprep.subr.mxu0 0.0
        %750 = vmatpush1.msra.mxu0 %v711
        %751 = vmatprep.subr.mxu0 0.0
        %752 = vmatpush2.msra.mxu0 0.0
        %753 = vmatprep.subr.mxu0 0.0
        %754 = vmatpush2.msra.mxu0 0.0
        %755 = vmatprep.subr.mxu0 0.0
        %756 = vmatpush2.msra.mxu0 0.0
        %757 = vmatprep.subr.mxu0 0.0
        %758 = vmatpush2.msra.mxu0 0.0
        %759 = vmatprep.subr.mxu0 0.0
        %760 = vmatpush2.msra.mxu0 0.0
        %761 = vmatprep.subr.mxu0 0.0
        %762 = vmatpush2.msra.mxu0 0.0
        %763 = vmatprep.subr.mxu0 0.0
        %764 = vmatpush2.msra.mxu0 0.0
        %765 = vmatprep.subr.mxu0 0.0
        %766 = vmatpush2.msra.mxu0 0.0
        %767 = vmatprep.subr.mxu0 0.0
        %768 = vmatpush2.msra.mxu0 0.0
        %769 = vmatprep.subr.mxu0 0.0
        %770 = vmatpush2.msra.mxu0 0.0
        %771 = vmatprep.subr.mxu0 0.0
        %772 = vmatpush2.msra.mxu0 0.0
        %773 = vmatprep.subr.mxu0 0.0
        %774 = vmatpush2.msra.mxu0 0.0
        %775 = vmatprep.subr.mxu0 0.0
        %776 = vmatpush2.msra.mxu0 0.0
        %777 = vmatprep.subr.mxu0 0.0
        %778 = vmatpush2.msra.mxu0 0.0
        %779 = vmatprep.subr.mxu0 0.0
        %780 = vmatpush2.msra.mxu0 0.0
        %781 = vmatprep.subr.mxu0 0.0
        %782 = vmatpush2.msra.mxu0 0.0
        %783 = vmatprep.mubr.f32.mxu0 0.0
        %784 = vmatmul.mubr.f32.gmra.mxu0 %v714
        %v785 = vpop.f32.mrf.mxu0
        %v786 = vadd.f32 0.0, %v785
        %v787 = vpop.f32.mrf.mxu0
        %788 = vmatprep.mubr.f32.mxu0 0.0
        %789 = vmatmul.mubr.f32.gmra.mxu0 %v717
        %v790 = vpop.f32.mrf.mxu0
        %v791 = vadd.f32 0.0, %v790
        %v792 = vpop.f32.mrf.mxu0
        %793 = vdwg.mxu0
        %v794 = vld [vmem:[#allocation10] sm:$0xff]
        %v795 = vld [vmem:[#allocation10 + $0x8] sm:$0xff]
        %v797 = vsel %vm546, %v703, 0
        %v800 = vsel %vm546, %v708, 0
        %802 = vmatprep.subr.mxu0 0.0
        %803 = vmatpush1.msra.mxu0 0.0
        %804 = vmatprep.subr.mxu0 0.0
        %805 = vmatpush1.msra.mxu0 0.0
        %806 = vmatprep.subr.mxu0 0.0
        %807 = vmatpush1.msra.mxu0 0.0
        %808 = vmatprep.subr.mxu0 0.0
        %809 = vmatpush1.msra.mxu0 0.0
        %810 = vmatprep.subr.mxu0 0.0
        %811 = vmatpush1.msra.mxu0 0.0
        %812 = vmatprep.subr.mxu0 0.0
        %813 = vmatpush1.msra.mxu0 0.0
        %814 = vmatprep.subr.mxu0 0.0
        %815 = vmatpush1.msra.mxu0 0.0
        %816 = vmatprep.subr.mxu0 0.0
        %817 = vmatpush1.msra.mxu0 0.0
        %818 = vmatprep.subr.mxu0 0.0
        %819 = vmatpush1.msra.mxu0 0.0
        %820 = vmatprep.subr.mxu0 0.0
        %821 = vmatpush1.msra.mxu0 0.0
        %822 = vmatprep.subr.mxu0 0.0
        %823 = vmatpush1.msra.mxu0 0.0
        %824 = vmatprep.subr.mxu0 0.0
        %825 = vmatpush1.msra.mxu0 0.0
        %826 = vmatprep.subr.mxu0 0.0
        %827 = vmatpush1.msra.mxu0 0.0
        %828 = vmatprep.subr.mxu0 0.0
        %829 = vmatpush1.msra.mxu0 0.0
        %830 = vmatprep.subr.mxu0 0.0
        %831 = vmatpush1.msra.mxu0 %v795
        %832 = vmatprep.subr.mxu0 0.0
        %833 = vmatpush1.msra.mxu0 %v794
        %834 = vmatprep.subr.mxu0 0.0
        %835 = vmatpush2.msra.mxu0 0.0
        %836 = vmatprep.subr.mxu0 0.0
        %837 = vmatpush2.msra.mxu0 0.0
        %838 = vmatprep.subr.mxu0 0.0
        %839 = vmatpush2.msra.mxu0 0.0
        %840 = vmatprep.subr.mxu0 0.0
        %841 = vmatpush2.msra.mxu0 0.0
        %842 = vmatprep.subr.mxu0 0.0
        %843 = vmatpush2.msra.mxu0 0.0
        %844 = vmatprep.subr.mxu0 0.0
        %845 = vmatpush2.msra.mxu0 0.0
        %846 = vmatprep.subr.mxu0 0.0
        %847 = vmatpush2.msra.mxu0 0.0
        %848 = vmatprep.subr.mxu0 0.0
        %849 = vmatpush2.msra.mxu0 0.0
        %850 = vmatprep.subr.mxu0 0.0
        %851 = vmatpush2.msra.mxu0 0.0
        %852 = vmatprep.subr.mxu0 0.0
        %853 = vmatpush2.msra.mxu0 0.0
        %854 = vmatprep.subr.mxu0 0.0
        %855 = vmatpush2.msra.mxu0 0.0
        %856 = vmatprep.subr.mxu0 0.0
        %857 = vmatpush2.msra.mxu0 0.0
        %858 = vmatprep.subr.mxu0 0.0
        %859 = vmatpush2.msra.mxu0 0.0
        %860 = vmatprep.subr.mxu0 0.0
        %861 = vmatpush2.msra.mxu0 0.0
        %862 = vmatprep.subr.mxu0 0.0
        %863 = vmatpush2.msra.mxu0 0.0
        %864 = vmatprep.subr.mxu0 0.0
        %865 = vmatpush2.msra.mxu0 0.0
        %866 = vmatprep.mubr.f32.mxu0 0.0
        %867 = vmatmul.mubr.f32.gmra.mxu0 %v797
        %v868 = vpop.f32.mrf.mxu0
        %v869 = vadd.f32 0.0, %v868
        %v870 = vpop.f32.mrf.mxu0
        %871 = vmatprep.mubr.f32.mxu0 0.0
        %872 = vmatmul.mubr.f32.gmra.mxu0 %v800
        %v873 = vpop.f32.mrf.mxu0
        %v874 = vadd.f32 0.0, %v873
        %v875 = vpop.f32.mrf.mxu0
        %876 = vdwg.mxu0
        %v877 = vsub.f32 %v786, %v869
        %v878 = vsub.f32 %v791, %v874
        %879 = vmatprep.subr.mxu0 0.0
        %880 = vmatpush1.msra.mxu0 0.0
        %881 = vmatprep.subr.mxu0 0.0
        %882 = vmatpush1.msra.mxu0 0.0
        %883 = vmatprep.subr.mxu0 0.0
        %884 = vmatpush1.msra.mxu0 0.0
        %885 = vmatprep.subr.mxu0 0.0
        %886 = vmatpush1.msra.mxu0 0.0
        %887 = vmatprep.subr.mxu0 0.0
        %888 = vmatpush1.msra.mxu0 0.0
        %889 = vmatprep.subr.mxu0 0.0
        %890 = vmatpush1.msra.mxu0 0.0
        %891 = vmatprep.subr.mxu0 0.0
        %892 = vmatpush1.msra.mxu0 0.0
        %893 = vmatprep.subr.mxu0 0.0
        %894 = vmatpush1.msra.mxu0 0.0
        %895 = vmatprep.subr.mxu0 0.0
        %896 = vmatpush1.msra.mxu0 0.0
        %897 = vmatprep.subr.mxu0 0.0
        %898 = vmatpush1.msra.mxu0 0.0
        %899 = vmatprep.subr.mxu0 0.0
        %900 = vmatpush1.msra.mxu0 0.0
        %901 = vmatprep.subr.mxu0 0.0
        %902 = vmatpush1.msra.mxu0 0.0
        %903 = vmatprep.subr.mxu0 0.0
        %904 = vmatpush1.msra.mxu0 0.0
        %905 = vmatprep.subr.mxu0 0.0
        %906 = vmatpush1.msra.mxu0 0.0
        %907 = vmatprep.subr.mxu0 0.0
        %908 = vmatpush1.msra.mxu0 %v712
        %909 = vmatprep.subr.mxu0 0.0
        %910 = vmatpush1.msra.mxu0 %v711
        %911 = vmatprep.subr.mxu0 0.0
        %912 = vmatpush2.msra.mxu0 0.0
        %913 = vmatprep.subr.mxu0 0.0
        %914 = vmatpush2.msra.mxu0 0.0
        %915 = vmatprep.subr.mxu0 0.0
        %916 = vmatpush2.msra.mxu0 0.0
        %917 = vmatprep.subr.mxu0 0.0
        %918 = vmatpush2.msra.mxu0 0.0
        %919 = vmatprep.subr.mxu0 0.0
        %920 = vmatpush2.msra.mxu0 0.0
        %921 = vmatprep.subr.mxu0 0.0
        %922 = vmatpush2.msra.mxu0 0.0
        %923 = vmatprep.subr.mxu0 0.0
        %924 = vmatpush2.msra.mxu0 0.0
        %925 = vmatprep.subr.mxu0 0.0
        %926 = vmatpush2.msra.mxu0 0.0
        %927 = vmatprep.subr.mxu0 0.0
        %928 = vmatpush2.msra.mxu0 0.0
        %929 = vmatprep.subr.mxu0 0.0
        %930 = vmatpush2.msra.mxu0 0.0
        %931 = vmatprep.subr.mxu0 0.0
        %932 = vmatpush2.msra.mxu0 0.0
        %933 = vmatprep.subr.mxu0 0.0
        %934 = vmatpush2.msra.mxu0 0.0
        %935 = vmatprep.subr.mxu0 0.0
        %936 = vmatpush2.msra.mxu0 0.0
        %937 = vmatprep.subr.mxu0 0.0
        %938 = vmatpush2.msra.mxu0 0.0
        %939 = vmatprep.subr.mxu0 0.0
        %940 = vmatpush2.msra.mxu0 0.0
        %941 = vmatprep.subr.mxu0 0.0
        %942 = vmatpush2.msra.mxu0 0.0
        %943 = vmatprep.mubr.f32.mxu0 0.0
        %944 = vmatmul.mubr.f32.gmra.mxu0 %v797
        %v945 = vpop.f32.mrf.mxu0
        %v946 = vadd.f32 0.0, %v945
        %v947 = vpop.f32.mrf.mxu0
        %948 = vmatprep.mubr.f32.mxu0 0.0
        %949 = vmatmul.mubr.f32.gmra.mxu0 %v800
        %v950 = vpop.f32.mrf.mxu0
        %v951 = vadd.f32 0.0, %v950
        %v952 = vpop.f32.mrf.mxu0
        %953 = vdwg.mxu0
        %954 = vmatprep.subr.mxu0 0.0
        %955 = vmatpush1.msra.mxu0 0.0
        %956 = vmatprep.subr.mxu0 0.0
        %957 = vmatpush1.msra.mxu0 0.0
        %958 = vmatprep.subr.mxu0 0.0
        %959 = vmatpush1.msra.mxu0 0.0
        %960 = vmatprep.subr.mxu0 0.0
        %961 = vmatpush1.msra.mxu0 0.0
        %962 = vmatprep.subr.mxu0 0.0
        %963 = vmatpush1.msra.mxu0 0.0
        %964 = vmatprep.subr.mxu0 0.0
        %965 = vmatpush1.msra.mxu0 0.0
        %966 = vmatprep.subr.mxu0 0.0
        %967 = vmatpush1.msra.mxu0 0.0
        %968 = vmatprep.subr.mxu0 0.0
        %969 = vmatpush1.msra.mxu0 0.0
        %970 = vmatprep.subr.mxu0 0.0
        %971 = vmatpush1.msra.mxu0 0.0
        %972 = vmatprep.subr.mxu0 0.0
        %973 = vmatpush1.msra.mxu0 0.0
        %974 = vmatprep.subr.mxu0 0.0
        %975 = vmatpush1.msra.mxu0 0.0
        %976 = vmatprep.subr.mxu0 0.0
        %977 = vmatpush1.msra.mxu0 0.0
        %978 = vmatprep.subr.mxu0 0.0
        %979 = vmatpush1.msra.mxu0 0.0
        %980 = vmatprep.subr.mxu0 0.0
        %981 = vmatpush1.msra.mxu0 0.0
        %982 = vmatprep.subr.mxu0 0.0
        %983 = vmatpush1.msra.mxu0 %v795
        %984 = vmatprep.subr.mxu0 0.0
        %985 = vmatpush1.msra.mxu0 %v794
        %986 = vmatprep.subr.mxu0 0.0
        %987 = vmatpush2.msra.mxu0 0.0
        %988 = vmatprep.subr.mxu0 0.0
        %989 = vmatpush2.msra.mxu0 0.0
        %990 = vmatprep.subr.mxu0 0.0
        %991 = vmatpush2.msra.mxu0 0.0
        %992 = vmatprep.subr.mxu0 0.0
        %993 = vmatpush2.msra.mxu0 0.0
        %994 = vmatprep.subr.mxu0 0.0
        %995 = vmatpush2.msra.mxu0 0.0
        %996 = vmatprep.subr.mxu0 0.0
        %997 = vmatpush2.msra.mxu0 0.0
        %998 = vmatprep.subr.mxu0 0.0
        %999 = vmatpush2.msra.mxu0 0.0
        %1000 = vmatprep.subr.mxu0 0.0
        %1001 = vmatpush2.msra.mxu0 0.0
        %1002 = vmatprep.subr.mxu0 0.0
        %1003 = vmatpush2.msra.mxu0 0.0
        %1004 = vmatprep.subr.mxu0 0.0
        %1005 = vmatpush2.msra.mxu0 0.0
        %1006 = vmatprep.subr.mxu0 0.0
        %1007 = vmatpush2.msra.mxu0 0.0
        %1008 = vmatprep.subr.mxu0 0.0
        %1009 = vmatpush2.msra.mxu0 0.0
        %1010 = vmatprep.subr.mxu0 0.0
        %1011 = vmatpush2.msra.mxu0 0.0
        %1012 = vmatprep.subr.mxu0 0.0
        %1013 = vmatpush2.msra.mxu0 0.0
        %1014 = vmatprep.subr.mxu0 0.0
        %1015 = vmatpush2.msra.mxu0 0.0
        %1016 = vmatprep.subr.mxu0 0.0
        %1017 = vmatpush2.msra.mxu0 0.0
        %1018 = vmatprep.mubr.f32.mxu0 0.0
        %1019 = vmatmul.mubr.f32.gmra.mxu0 %v714
        %v1020 = vpop.f32.mrf.mxu0
        %v1021 = vadd.f32 %v946, %v1020
        %v1022 = vpop.f32.mrf.mxu0
        %1023 = vmatprep.mubr.f32.mxu0 0.0
        %1024 = vmatmul.mubr.f32.gmra.mxu0 %v717
        %v1025 = vpop.f32.mrf.mxu0
        %v1026 = vadd.f32 %v951, %v1025
        %v1027 = vpop.f32.mrf.mxu0
        %1028 = vdwg.mxu0
        %v1029 = vld [vmem:[#allocation11] sm:$0xff]
        %v1030 = vld [vmem:[#allocation11 + $0x8] sm:$0xff]
        %v1032 = vsel %vm546, %v1029, 0
        %v1035 = vsel %vm546, %v1030, 0
        %1037 = vmatprep.subr.mxu0 0.0
        %1038 = vmatpush1.msra.mxu0 0.0
        %1039 = vmatprep.subr.mxu0 0.0
        %1040 = vmatpush1.msra.mxu0 0.0
        %1041 = vmatprep.subr.mxu0 0.0
        %1042 = vmatpush1.msra.mxu0 0.0
        %1043 = vmatprep.subr.mxu0 0.0
        %1044 = vmatpush1.msra.mxu0 0.0
        %1045 = vmatprep.subr.mxu0 0.0
        %1046 = vmatpush1.msra.mxu0 0.0
        %1047 = vmatprep.subr.mxu0 0.0
        %1048 = vmatpush1.msra.mxu0 0.0
        %1049 = vmatprep.subr.mxu0 0.0
        %1050 = vmatpush1.msra.mxu0 0.0
        %1051 = vmatprep.subr.mxu0 0.0
        %1052 = vmatpush1.msra.mxu0 0.0
        %1053 = vmatprep.subr.mxu0 0.0
        %1054 = vmatpush1.msra.mxu0 0.0
        %1055 = vmatprep.subr.mxu0 0.0
        %1056 = vmatpush1.msra.mxu0 0.0
        %1057 = vmatprep.subr.mxu0 0.0
        %1058 = vmatpush1.msra.mxu0 0.0
        %1059 = vmatprep.subr.mxu0 0.0
        %1060 = vmatpush1.msra.mxu0 0.0
        %1061 = vmatprep.subr.mxu0 0.0
        %1062 = vmatpush1.msra.mxu0 0.0
        %1063 = vmatprep.subr.mxu0 0.0
        %1064 = vmatpush1.msra.mxu0 0.0
        %1065 = vmatprep.subr.mxu0 0.0
        %1066 = vmatpush1.msra.mxu0 %v543
        %1067 = vmatprep.subr.mxu0 0.0
        %1068 = vmatpush1.msra.mxu0 %v542
        %1069 = vmatprep.subr.mxu0 0.0
        %1070 = vmatpush2.msra.mxu0 0.0
        %1071 = vmatprep.subr.mxu0 0.0
        %1072 = vmatpush2.msra.mxu0 0.0
        %1073 = vmatprep.subr.mxu0 0.0
        %1074 = vmatpush2.msra.mxu0 0.0
        %1075 = vmatprep.subr.mxu0 0.0
        %1076 = vmatpush2.msra.mxu0 0.0
        %1077 = vmatprep.subr.mxu0 0.0
        %1078 = vmatpush2.msra.mxu0 0.0
        %1079 = vmatprep.subr.mxu0 0.0
        %1080 = vmatpush2.msra.mxu0 0.0
        %1081 = vmatprep.subr.mxu0 0.0
        %1082 = vmatpush2.msra.mxu0 0.0
        %1083 = vmatprep.subr.mxu0 0.0
        %1084 = vmatpush2.msra.mxu0 0.0
        %1085 = vmatprep.subr.mxu0 0.0
        %1086 = vmatpush2.msra.mxu0 0.0
        %1087 = vmatprep.subr.mxu0 0.0
        %1088 = vmatpush2.msra.mxu0 0.0
        %1089 = vmatprep.subr.mxu0 0.0
        %1090 = vmatpush2.msra.mxu0 0.0
        %1091 = vmatprep.subr.mxu0 0.0
        %1092 = vmatpush2.msra.mxu0 0.0
        %1093 = vmatprep.subr.mxu0 0.0
        %1094 = vmatpush2.msra.mxu0 0.0
        %1095 = vmatprep.subr.mxu0 0.0
        %1096 = vmatpush2.msra.mxu0 0.0
        %1097 = vmatprep.subr.mxu0 0.0
        %1098 = vmatpush2.msra.mxu0 0.0
        %1099 = vmatprep.subr.mxu0 0.0
        %1100 = vmatpush2.msra.mxu0 0.0
        %1101 = vmatprep.mubr.f32.mxu0 0.0
        %1102 = vmatmul.mubr.f32.gmra.mxu0 %v1032
        %v1103 = vpop.f32.mrf.mxu0
        %v1104 = vadd.f32 0.0, %v1103
        %v1105 = vpop.f32.mrf.mxu0
        %1106 = vmatprep.mubr.f32.mxu0 0.0
        %1107 = vmatmul.mubr.f32.gmra.mxu0 %v1035
        %v1108 = vpop.f32.mrf.mxu0
        %v1109 = vadd.f32 0.0, %v1108
        %v1110 = vpop.f32.mrf.mxu0
        %1111 = vdwg.mxu0
        %v1112 = vld [vmem:[#allocation13] sm:$0xff]
        %v1113 = vld [vmem:[#allocation13 + $0x8] sm:$0xff]
        %v1115 = vsel %vm546, %v1112, 0
        %v1118 = vsel %vm546, %v1113, 0
        %1120 = vmatprep.subr.mxu0 0.0
        %1121 = vmatpush1.msra.mxu0 0.0
        %1122 = vmatprep.subr.mxu0 0.0
        %1123 = vmatpush1.msra.mxu0 0.0
        %1124 = vmatprep.subr.mxu0 0.0
        %1125 = vmatpush1.msra.mxu0 0.0
        %1126 = vmatprep.subr.mxu0 0.0
        %1127 = vmatpush1.msra.mxu0 0.0
        %1128 = vmatprep.subr.mxu0 0.0
        %1129 = vmatpush1.msra.mxu0 0.0
        %1130 = vmatprep.subr.mxu0 0.0
        %1131 = vmatpush1.msra.mxu0 0.0
        %1132 = vmatprep.subr.mxu0 0.0
        %1133 = vmatpush1.msra.mxu0 0.0
        %1134 = vmatprep.subr.mxu0 0.0
        %1135 = vmatpush1.msra.mxu0 0.0
        %1136 = vmatprep.subr.mxu0 0.0
        %1137 = vmatpush1.msra.mxu0 0.0
        %1138 = vmatprep.subr.mxu0 0.0
        %1139 = vmatpush1.msra.mxu0 0.0
        %1140 = vmatprep.subr.mxu0 0.0
        %1141 = vmatpush1.msra.mxu0 0.0
        %1142 = vmatprep.subr.mxu0 0.0
        %1143 = vmatpush1.msra.mxu0 0.0
        %1144 = vmatprep.subr.mxu0 0.0
        %1145 = vmatpush1.msra.mxu0 0.0
        %1146 = vmatprep.subr.mxu0 0.0
        %1147 = vmatpush1.msra.mxu0 0.0
        %1148 = vmatprep.subr.mxu0 0.0
        %1149 = vmatpush1.msra.mxu0 %v543
        %1150 = vmatprep.subr.mxu0 0.0
        %1151 = vmatpush1.msra.mxu0 %v542
        %1152 = vmatprep.subr.mxu0 0.0
        %1153 = vmatpush2.msra.mxu0 0.0
        %1154 = vmatprep.subr.mxu0 0.0
        %1155 = vmatpush2.msra.mxu0 0.0
        %1156 = vmatprep.subr.mxu0 0.0
        %1157 = vmatpush2.msra.mxu0 0.0
        %1158 = vmatprep.subr.mxu0 0.0
        %1159 = vmatpush2.msra.mxu0 0.0
        %1160 = vmatprep.subr.mxu0 0.0
        %1161 = vmatpush2.msra.mxu0 0.0
        %1162 = vmatprep.subr.mxu0 0.0
        %1163 = vmatpush2.msra.mxu0 0.0
        %1164 = vmatprep.subr.mxu0 0.0
        %1165 = vmatpush2.msra.mxu0 0.0
        %1166 = vmatprep.subr.mxu0 0.0
        %1167 = vmatpush2.msra.mxu0 0.0
        %1168 = vmatprep.subr.mxu0 0.0
        %1169 = vmatpush2.msra.mxu0 0.0
        %1170 = vmatprep.subr.mxu0 0.0
        %1171 = vmatpush2.msra.mxu0 0.0
        %1172 = vmatprep.subr.mxu0 0.0
        %1173 = vmatpush2.msra.mxu0 0.0
        %1174 = vmatprep.subr.mxu0 0.0
        %1175 = vmatpush2.msra.mxu0 0.0
        %1176 = vmatprep.subr.mxu0 0.0
        %1177 = vmatpush2.msra.mxu0 0.0
        %1178 = vmatprep.subr.mxu0 0.0
        %1179 = vmatpush2.msra.mxu0 0.0
        %1180 = vmatprep.subr.mxu0 0.0
        %1181 = vmatpush2.msra.mxu0 0.0
        %1182 = vmatprep.subr.mxu0 0.0
        %1183 = vmatpush2.msra.mxu0 0.0
        %1184 = vmatprep.mubr.f32.mxu0 0.0
        %1185 = vmatmul.mubr.f32.gmra.mxu0 %v1115
        %v1186 = vpop.f32.mrf.mxu0
        %v1187 = vadd.f32 0.0, %v1186
        %v1188 = vpop.f32.mrf.mxu0
        %1189 = vmatprep.mubr.f32.mxu0 0.0
        %1190 = vmatmul.mubr.f32.gmra.mxu0 %v1118
        %v1191 = vpop.f32.mrf.mxu0
        %v1192 = vadd.f32 0.0, %v1191
        %v1193 = vpop.f32.mrf.mxu0
        %1194 = vdwg.mxu0
        %v1195 = vld [vmem:[#allocation14] sm:$0xff]
        %v1196 = vld [vmem:[#allocation14 + $0x8] sm:$0xff]
        %v1198 = vsel %vm546, %v1104, 0
        %v1201 = vsel %vm546, %v1109, 0
        %1203 = vmatprep.subr.mxu0 0.0
        %1204 = vmatpush1.msra.mxu0 0.0
        %1205 = vmatprep.subr.mxu0 0.0
        %1206 = vmatpush1.msra.mxu0 0.0
        %1207 = vmatprep.subr.mxu0 0.0
        %1208 = vmatpush1.msra.mxu0 0.0
        %1209 = vmatprep.subr.mxu0 0.0
        %1210 = vmatpush1.msra.mxu0 0.0
        %1211 = vmatprep.subr.mxu0 0.0
        %1212 = vmatpush1.msra.mxu0 0.0
        %1213 = vmatprep.subr.mxu0 0.0
        %1214 = vmatpush1.msra.mxu0 0.0
        %1215 = vmatprep.subr.mxu0 0.0
        %1216 = vmatpush1.msra.mxu0 0.0
        %1217 = vmatprep.subr.mxu0 0.0
        %1218 = vmatpush1.msra.mxu0 0.0
        %1219 = vmatprep.subr.mxu0 0.0
        %1220 = vmatpush1.msra.mxu0 0.0
        %1221 = vmatprep.subr.mxu0 0.0
        %1222 = vmatpush1.msra.mxu0 0.0
        %1223 = vmatprep.subr.mxu0 0.0
        %1224 = vmatpush1.msra.mxu0 0.0
        %1225 = vmatprep.subr.mxu0 0.0
        %1226 = vmatpush1.msra.mxu0 0.0
        %1227 = vmatprep.subr.mxu0 0.0
        %1228 = vmatpush1.msra.mxu0 0.0
        %1229 = vmatprep.subr.mxu0 0.0
        %1230 = vmatpush1.msra.mxu0 0.0
        %1231 = vmatprep.subr.mxu0 0.0
        %1232 = vmatpush1.msra.mxu0 %v1196
        %1233 = vmatprep.subr.mxu0 0.0
        %1234 = vmatpush1.msra.mxu0 %v1195
        %1235 = vmatprep.subr.mxu0 0.0
        %1236 = vmatpush2.msra.mxu0 0.0
        %1237 = vmatprep.subr.mxu0 0.0
        %1238 = vmatpush2.msra.mxu0 0.0
        %1239 = vmatprep.subr.mxu0 0.0
        %1240 = vmatpush2.msra.mxu0 0.0
        %1241 = vmatprep.subr.mxu0 0.0
        %1242 = vmatpush2.msra.mxu0 0.0
        %1243 = vmatprep.subr.mxu0 0.0
        %1244 = vmatpush2.msra.mxu0 0.0
        %1245 = vmatprep.subr.mxu0 0.0
        %1246 = vmatpush2.msra.mxu0 0.0
        %1247 = vmatprep.subr.mxu0 0.0
        %1248 = vmatpush2.msra.mxu0 0.0
        %1249 = vmatprep.subr.mxu0 0.0
        %1250 = vmatpush2.msra.mxu0 0.0
        %1251 = vmatprep.subr.mxu0 0.0
        %1252 = vmatpush2.msra.mxu0 0.0
        %1253 = vmatprep.subr.mxu0 0.0
        %1254 = vmatpush2.msra.mxu0 0.0
        %1255 = vmatprep.subr.mxu0 0.0
        %1256 = vmatpush2.msra.mxu0 0.0
        %1257 = vmatprep.subr.mxu0 0.0
        %1258 = vmatpush2.msra.mxu0 0.0
        %1259 = vmatprep.subr.mxu0 0.0
        %1260 = vmatpush2.msra.mxu0 0.0
        %1261 = vmatprep.subr.mxu0 0.0
        %1262 = vmatpush2.msra.mxu0 0.0
        %1263 = vmatprep.subr.mxu0 0.0
        %1264 = vmatpush2.msra.mxu0 0.0
        %1265 = vmatprep.subr.mxu0 0.0
        %1266 = vmatpush2.msra.mxu0 0.0
        %1267 = vmatprep.mubr.f32.mxu0 0.0
        %1268 = vmatmul.mubr.f32.gmra.mxu0 %v1198
        %v1269 = vpop.f32.mrf.mxu0
        %v1270 = vadd.f32 0.0, %v1269
        %v1271 = vpop.f32.mrf.mxu0
        %1272 = vmatprep.mubr.f32.mxu0 0.0
        %1273 = vmatmul.mubr.f32.gmra.mxu0 %v1201
        %v1274 = vpop.f32.mrf.mxu0
        %v1275 = vadd.f32 0.0, %v1274
        %v1276 = vpop.f32.mrf.mxu0
        %1277 = vdwg.mxu0
        %v1278 = vld [vmem:[#allocation16] sm:$0xff]
        %v1279 = vld [vmem:[#allocation16 + $0x8] sm:$0xff]
        %v1281 = vsel %vm546, %v1187, 0
        %v1284 = vsel %vm546, %v1192, 0
        %1286 = vmatprep.subr.mxu0 0.0
        %1287 = vmatpush1.msra.mxu0 0.0
        %1288 = vmatprep.subr.mxu0 0.0
        %1289 = vmatpush1.msra.mxu0 0.0
        %1290 = vmatprep.subr.mxu0 0.0
        %1291 = vmatpush1.msra.mxu0 0.0
        %1292 = vmatprep.subr.mxu0 0.0
        %1293 = vmatpush1.msra.mxu0 0.0
        %1294 = vmatprep.subr.mxu0 0.0
        %1295 = vmatpush1.msra.mxu0 0.0
        %1296 = vmatprep.subr.mxu0 0.0
        %1297 = vmatpush1.msra.mxu0 0.0
        %1298 = vmatprep.subr.mxu0 0.0
        %1299 = vmatpush1.msra.mxu0 0.0
        %1300 = vmatprep.subr.mxu0 0.0
        %1301 = vmatpush1.msra.mxu0 0.0
        %1302 = vmatprep.subr.mxu0 0.0
        %1303 = vmatpush1.msra.mxu0 0.0
        %1304 = vmatprep.subr.mxu0 0.0
        %1305 = vmatpush1.msra.mxu0 0.0
        %1306 = vmatprep.subr.mxu0 0.0
        %1307 = vmatpush1.msra.mxu0 0.0
        %1308 = vmatprep.subr.mxu0 0.0
        %1309 = vmatpush1.msra.mxu0 0.0
        %1310 = vmatprep.subr.mxu0 0.0
        %1311 = vmatpush1.msra.mxu0 0.0
        %1312 = vmatprep.subr.mxu0 0.0
        %1313 = vmatpush1.msra.mxu0 0.0
        %1314 = vmatprep.subr.mxu0 0.0
        %1315 = vmatpush1.msra.mxu0 %v1279
        %1316 = vmatprep.subr.mxu0 0.0
        %1317 = vmatpush1.msra.mxu0 %v1278
        %1318 = vmatprep.subr.mxu0 0.0
        %1319 = vmatpush2.msra.mxu0 0.0
        %1320 = vmatprep.subr.mxu0 0.0
        %1321 = vmatpush2.msra.mxu0 0.0
        %1322 = vmatprep.subr.mxu0 0.0
        %1323 = vmatpush2.msra.mxu0 0.0
        %1324 = vmatprep.subr.mxu0 0.0
        %1325 = vmatpush2.msra.mxu0 0.0
        %1326 = vmatprep.subr.mxu0 0.0
        %1327 = vmatpush2.msra.mxu0 0.0
        %1328 = vmatprep.subr.mxu0 0.0
        %1329 = vmatpush2.msra.mxu0 0.0
        %1330 = vmatprep.subr.mxu0 0.0
        %1331 = vmatpush2.msra.mxu0 0.0
        %1332 = vmatprep.subr.mxu0 0.0
        %1333 = vmatpush2.msra.mxu0 0.0
        %1334 = vmatprep.subr.mxu0 0.0
        %1335 = vmatpush2.msra.mxu0 0.0
        %1336 = vmatprep.subr.mxu0 0.0
        %1337 = vmatpush2.msra.mxu0 0.0
        %1338 = vmatprep.subr.mxu0 0.0
        %1339 = vmatpush2.msra.mxu0 0.0
        %1340 = vmatprep.subr.mxu0 0.0
        %1341 = vmatpush2.msra.mxu0 0.0
        %1342 = vmatprep.subr.mxu0 0.0
        %1343 = vmatpush2.msra.mxu0 0.0
        %1344 = vmatprep.subr.mxu0 0.0
        %1345 = vmatpush2.msra.mxu0 0.0
        %1346 = vmatprep.subr.mxu0 0.0
        %1347 = vmatpush2.msra.mxu0 0.0
        %1348 = vmatprep.subr.mxu0 0.0
        %1349 = vmatpush2.msra.mxu0 0.0
        %1350 = vmatprep.mubr.f32.mxu0 0.0
        %1351 = vmatmul.mubr.f32.gmra.mxu0 %v1281
        %v1352 = vpop.f32.mrf.mxu0
        %v1353 = vadd.f32 0.0, %v1352
        %v1354 = vpop.f32.mrf.mxu0
        %1355 = vmatprep.mubr.f32.mxu0 0.0
        %1356 = vmatmul.mubr.f32.gmra.mxu0 %v1284
        %v1357 = vpop.f32.mrf.mxu0
        %v1358 = vadd.f32 0.0, %v1357
        %v1359 = vpop.f32.mrf.mxu0
        %1360 = vdwg.mxu0
        %v1361 = vsub.f32 %v1270, %v1353
        %v1362 = vsub.f32 %v1275, %v1358
        %1363 = vmatprep.subr.mxu0 0.0
        %1364 = vmatpush1.msra.mxu0 0.0
        %1365 = vmatprep.subr.mxu0 0.0
        %1366 = vmatpush1.msra.mxu0 0.0
        %1367 = vmatprep.subr.mxu0 0.0
        %1368 = vmatpush1.msra.mxu0 0.0
        %1369 = vmatprep.subr.mxu0 0.0
        %1370 = vmatpush1.msra.mxu0 0.0
        %1371 = vmatprep.subr.mxu0 0.0
        %1372 = vmatpush1.msra.mxu0 0.0
        %1373 = vmatprep.subr.mxu0 0.0
        %1374 = vmatpush1.msra.mxu0 0.0
        %1375 = vmatprep.subr.mxu0 0.0
        %1376 = vmatpush1.msra.mxu0 0.0
        %1377 = vmatprep.subr.mxu0 0.0
        %1378 = vmatpush1.msra.mxu0 0.0
        %1379 = vmatprep.subr.mxu0 0.0
        %1380 = vmatpush1.msra.mxu0 0.0
        %1381 = vmatprep.subr.mxu0 0.0
        %1382 = vmatpush1.msra.mxu0 0.0
        %1383 = vmatprep.subr.mxu0 0.0
        %1384 = vmatpush1.msra.mxu0 0.0
        %1385 = vmatprep.subr.mxu0 0.0
        %1386 = vmatpush1.msra.mxu0 0.0
        %1387 = vmatprep.subr.mxu0 0.0
        %1388 = vmatpush1.msra.mxu0 0.0
        %1389 = vmatprep.subr.mxu0 0.0
        %1390 = vmatpush1.msra.mxu0 0.0
        %1391 = vmatprep.subr.mxu0 0.0
        %1392 = vmatpush1.msra.mxu0 %v1196
        %1393 = vmatprep.subr.mxu0 0.0
        %1394 = vmatpush1.msra.mxu0 %v1195
        %1395 = vmatprep.subr.mxu0 0.0
        %1396 = vmatpush2.msra.mxu0 0.0
        %1397 = vmatprep.subr.mxu0 0.0
        %1398 = vmatpush2.msra.mxu0 0.0
        %1399 = vmatprep.subr.mxu0 0.0
        %1400 = vmatpush2.msra.mxu0 0.0
        %1401 = vmatprep.subr.mxu0 0.0
        %1402 = vmatpush2.msra.mxu0 0.0
        %1403 = vmatprep.subr.mxu0 0.0
        %1404 = vmatpush2.msra.mxu0 0.0
        %1405 = vmatprep.subr.mxu0 0.0
        %1406 = vmatpush2.msra.mxu0 0.0
        %1407 = vmatprep.subr.mxu0 0.0
        %1408 = vmatpush2.msra.mxu0 0.0
        %1409 = vmatprep.subr.mxu0 0.0
        %1410 = vmatpush2.msra.mxu0 0.0
        %1411 = vmatprep.subr.mxu0 0.0
        %1412 = vmatpush2.msra.mxu0 0.0
        %1413 = vmatprep.subr.mxu0 0.0
        %1414 = vmatpush2.msra.mxu0 0.0
        %1415 = vmatprep.subr.mxu0 0.0
        %1416 = vmatpush2.msra.mxu0 0.0
        %1417 = vmatprep.subr.mxu0 0.0
        %1418 = vmatpush2.msra.mxu0 0.0
        %1419 = vmatprep.subr.mxu0 0.0
        %1420 = vmatpush2.msra.mxu0 0.0
        %1421 = vmatprep.subr.mxu0 0.0
        %1422 = vmatpush2.msra.mxu0 0.0
        %1423 = vmatprep.subr.mxu0 0.0
        %1424 = vmatpush2.msra.mxu0 0.0
        %1425 = vmatprep.subr.mxu0 0.0
        %1426 = vmatpush2.msra.mxu0 0.0
        %1427 = vmatprep.mubr.f32.mxu0 0.0
        %1428 = vmatmul.mubr.f32.gmra.mxu0 %v1281
        %v1429 = vpop.f32.mrf.mxu0
        %v1430 = vadd.f32 0.0, %v1429
        %v1431 = vpop.f32.mrf.mxu0
        %1432 = vmatprep.mubr.f32.mxu0 0.0
        %1433 = vmatmul.mubr.f32.gmra.mxu0 %v1284
        %v1434 = vpop.f32.mrf.mxu0
        %v1435 = vadd.f32 0.0, %v1434
        %v1436 = vpop.f32.mrf.mxu0
        %1437 = vdwg.mxu0
        %1438 = vmatprep.subr.mxu0 0.0
        %1439 = vmatpush1.msra.mxu0 0.0
        %1440 = vmatprep.subr.mxu0 0.0
        %1441 = vmatpush1.msra.mxu0 0.0
        %1442 = vmatprep.subr.mxu0 0.0
        %1443 = vmatpush1.msra.mxu0 0.0
        %1444 = vmatprep.subr.mxu0 0.0
        %1445 = vmatpush1.msra.mxu0 0.0
        %1446 = vmatprep.subr.mxu0 0.0
        %1447 = vmatpush1.msra.mxu0 0.0
        %1448 = vmatprep.subr.mxu0 0.0
        %1449 = vmatpush1.msra.mxu0 0.0
        %1450 = vmatprep.subr.mxu0 0.0
        %1451 = vmatpush1.msra.mxu0 0.0
        %1452 = vmatprep.subr.mxu0 0.0
        %1453 = vmatpush1.msra.mxu0 0.0
        %1454 = vmatprep.subr.mxu0 0.0
        %1455 = vmatpush1.msra.mxu0 0.0
        %1456 = vmatprep.subr.mxu0 0.0
        %1457 = vmatpush1.msra.mxu0 0.0
        %1458 = vmatprep.subr.mxu0 0.0
        %1459 = vmatpush1.msra.mxu0 0.0
        %1460 = vmatprep.subr.mxu0 0.0
        %1461 = vmatpush1.msra.mxu0 0.0
        %1462 = vmatprep.subr.mxu0 0.0
        %1463 = vmatpush1.msra.mxu0 0.0
        %1464 = vmatprep.subr.mxu0 0.0
        %1465 = vmatpush1.msra.mxu0 0.0
        %1466 = vmatprep.subr.mxu0 0.0
        %1467 = vmatpush1.msra.mxu0 %v1279
        %1468 = vmatprep.subr.mxu0 0.0
        %1469 = vmatpush1.msra.mxu0 %v1278
        %1470 = vmatprep.subr.mxu0 0.0
        %1471 = vmatpush2.msra.mxu0 0.0
        %1472 = vmatprep.subr.mxu0 0.0
        %1473 = vmatpush2.msra.mxu0 0.0
        %1474 = vmatprep.subr.mxu0 0.0
        %1475 = vmatpush2.msra.mxu0 0.0
        %1476 = vmatprep.subr.mxu0 0.0
        %1477 = vmatpush2.msra.mxu0 0.0
        %1478 = vmatprep.subr.mxu0 0.0
        %1479 = vmatpush2.msra.mxu0 0.0
        %1480 = vmatprep.subr.mxu0 0.0
        %1481 = vmatpush2.msra.mxu0 0.0
        %1482 = vmatprep.subr.mxu0 0.0
        %1483 = vmatpush2.msra.mxu0 0.0
        %1484 = vmatprep.subr.mxu0 0.0
        %1485 = vmatpush2.msra.mxu0 0.0
        %1486 = vmatprep.subr.mxu0 0.0
        %1487 = vmatpush2.msra.mxu0 0.0
        %1488 = vmatprep.subr.mxu0 0.0
        %1489 = vmatpush2.msra.mxu0 0.0
        %1490 = vmatprep.subr.mxu0 0.0
        %1491 = vmatpush2.msra.mxu0 0.0
        %1492 = vmatprep.subr.mxu0 0.0
        %1493 = vmatpush2.msra.mxu0 0.0
        %1494 = vmatprep.subr.mxu0 0.0
        %1495 = vmatpush2.msra.mxu0 0.0
        %1496 = vmatprep.subr.mxu0 0.0
        %1497 = vmatpush2.msra.mxu0 0.0
        %1498 = vmatprep.subr.mxu0 0.0
        %1499 = vmatpush2.msra.mxu0 0.0
        %1500 = vmatprep.subr.mxu0 0.0
        %1501 = vmatpush2.msra.mxu0 0.0
        %1502 = vmatprep.mubr.f32.mxu0 0.0
        %1503 = vmatmul.mubr.f32.gmra.mxu0 %v1198
        %v1504 = vpop.f32.mrf.mxu0
        %v1505 = vadd.f32 %v1430, %v1504
        %v1506 = vpop.f32.mrf.mxu0
        %1507 = vmatprep.mubr.f32.mxu0 0.0
        %1508 = vmatmul.mubr.f32.gmra.mxu0 %v1201
        %v1509 = vpop.f32.mrf.mxu0
        %v1510 = vadd.f32 %v1435, %v1509
        %v1511 = vpop.f32.mrf.mxu0
        %1512 = vdwg.mxu0
        %v1513 = vmul.f32 %v1361, %v877
        %v1514 = vmul.f32 %v1362, %v878
        %v1515 = vmul.f32 %v1505, %v1021
        %v1516 = vmul.f32 %v1510, %v1026
        %v1517 = vadd.f32 %v1513, %v1515
        %v1518 = vadd.f32 %v1514, %v1516
        %1519 = vst.msk [vmem:[%s524] sm:$0xff] %vm546, %v1517
        %1520 = vst.msk [vmem:[%s524 + $0x8] sm:$0xff] %vm546, %v1518
        %v1521 = vmul.f32 %v1361, %v1021
        %v1522 = vmul.f32 %v1362, %v1026
        %v1523 = vmul.f32 %v1505, %v877
        %v1524 = vmul.f32 %v1510, %v878
        %v1525 = vsub.f32 %v1521, %v1523
        %v1526 = vsub.f32 %v1522, %v1524
        %1527 = vst.msk [vmem:[%s531] sm:$0xff] %vm546, %v1525
        %1528 = vst.msk [vmem:[%s531 + $0x8] sm:$0xff] %vm546, %v1526
        %v1529 = vmul.f32 %v1361, %v1361
        %v1530 = vmul.f32 %v1362, %v1362
        %v1531 = vmul.f32 %v1505, %v1505
        %v1532 = vmul.f32 %v1510, %v1510
        %v1533 = vadd.f32 %v1529, %v1531
        %v1534 = vadd.f32 %v1530, %v1532
        %1535 = vst.msk [vmem:[%s538] sm:$0xff] %vm546, %v1533
        %1536 = vst.msk [vmem:[%s538 + $0x8] sm:$0xff] %vm546, %v1534
        %s1537 = sand.u32 %s238, 1
        %s1538 = scalar_lea.sflag [#allocation4], %s1537
        %s1539 = sand.u32 %s238, 1
        %s1540 = smul.addr %s1539, 16
        %s1541 = scalar_lea.vmem [#allocation17], %s1540
        %s1542 = sand.u32 %s36, 1
        %s1543 = scalar_lea.sflag [#allocation19], %s1542
        %s1544 = sand.u32 %s264, 1
        %s1545 = smul.addr %s1544, 16
        %s1546 = scalar_lea.vmem [#allocation18], %s1545
        %s1547 = sand.u32 %s36, 1
        %s1548 = scalar_lea.sflag [#allocation19], %s1547
        %s1549 = sand.u32 %s290, 1
        %s1550 = smul.addr %s1549, 16
        %s1551 = scalar_lea.vmem [#allocation20], %s1550
        // Predicated region
        $region93: #{tpu_custom_call.1} parent=55 // pred_check
          %p1552 = pneg %p248
        $region94: #{tpu_custom_call.1} parent=55 // pred_check_branch
          %1554 = sbr.rel (%p1552) target = $region96
        $region95: #{tpu_custom_call.1} parent=55 // pred_region
          %s1556 = ssub.s32 256, 256
          %1557 = vsyncadd %s1538, %s1556
          %s1558 = smul.addr %s36, 2
          %s1559 = smul.addr %s1558, 128
          %s1560 = scalar_lea.hbm %s9, %s1559
          %s1561 = sshll.u32 %s1541, 4
          %s1562 = int_to_ptr.vmem [resolvable:$true] %s1561
          %1567 = dma.vmem_to_hbm [thread:$0]  %s1562, 256, %s1560, %s1538, 128, 128, 8
        $region96: #{tpu_custom_call.1} parent=55 // pred_fallthru
          _
        // Predicated region
        $region97: #{tpu_custom_call.1} parent=55 // pred_check
          %p1568 = pneg %p274
        $region98: #{tpu_custom_call.1} parent=55 // pred_check_branch
          %1570 = sbr.rel (%p1568) target = $region100
        $region99: #{tpu_custom_call.1} parent=55 // pred_region
          %s1572 = ssub.s32 256, 256
          %1573 = vsyncadd %s1543, %s1572
          %s1574 = smul.addr %s36, 2
          %s1575 = smul.addr %s1574, 128
          %s1576 = scalar_lea.hbm %s10, %s1575
          %s1577 = sshll.u32 %s1546, 4
          %s1578 = int_to_ptr.vmem [resolvable:$true] %s1577
          %1583 = dma.vmem_to_hbm [thread:$0]  %s1578, 256, %s1576, %s1543, 128, 128, 8
        $region100: #{tpu_custom_call.1} parent=55 // pred_fallthru
          _
        // Predicated region
        $region101: #{tpu_custom_call.1} parent=55 // pred_check
          %p1584 = pneg %p300
        $region102: #{tpu_custom_call.1} parent=55 // pred_check_branch
          %1586 = sbr.rel (%p1584) target = $region104
        $region103: #{tpu_custom_call.1} parent=55 // pred_region
          %s1588 = ssub.s32 256, 256
          %1589 = vsyncadd %s1548, %s1588
          %s1590 = smul.addr %s36, 2
          %s1591 = smul.addr %s1590, 128
          %s1592 = scalar_lea.hbm %s11, %s1591
          %s1593 = sshll.u32 %s1551, 4
          %s1594 = int_to_ptr.vmem [resolvable:$true] %s1593
          %1599 = dma.vmem_to_hbm [thread:$0]  %s1594, 256, %s1592, %s1548, 128, 128, 8
        $region104: #{tpu_custom_call.1} parent=55 // pred_fallthru
          _
      $region56: #{tpu_custom_call.1} parent=5 // pred_fallthru
        _
      %p1600 = scmp.le.s32.totalorder 2, %s31
      // Predicated region
      $region105: #{tpu_custom_call.1} parent=5 // pred_check
        %p1601 = pneg %p1600
      $region106: #{tpu_custom_call.1} parent=5 // pred_check_branch
        %1603 = sbr.rel (%p1601) target = $region108
      $region107: #{tpu_custom_call.1} parent=5 // pred_region
        %s1604 = ssub.s32 %s31, 2
        // Predicated region
        $region109: #{tpu_custom_call.1} parent=107 // pred_check
          %p1605 = pneg %p254
        $region110: #{tpu_custom_call.1} parent=107 // pred_check_branch
          %1607 = sbr.rel (%p1605) target = $region112
        $region111: #{tpu_custom_call.1} parent=107 // pred_region
          %s1608 = sand.u32 %s239, 1
          %s1609 = scalar_lea.sflag [#allocation4], %s1608
          %s1610 = sand.u32 %s239, 1
          %s1611 = smul.addr %s1610, 16
          %s1612 = scalar_lea.vmem [#allocation17], %s1611
          %1613 = dma.done %s1609, 256
        $region112: #{tpu_custom_call.1} parent=107 // pred_fallthru
          _
        // Predicated region
        $region113: #{tpu_custom_call.1} parent=107 // pred_check
          %p1614 = pneg %p280
        $region114: #{tpu_custom_call.1} parent=107 // pred_check_branch
          %1616 = sbr.rel (%p1614) target = $region116
        $region115: #{tpu_custom_call.1} parent=107 // pred_region
          %s1617 = sand.u32 %s37, 1
          %s1618 = scalar_lea.sflag [#allocation19], %s1617
          %s1619 = sand.u32 %s265, 1
          %s1620 = smul.addr %s1619, 16
          %s1621 = scalar_lea.vmem [#allocation18], %s1620
          %1622 = dma.done %s1618, 256
        $region116: #{tpu_custom_call.1} parent=107 // pred_fallthru
          _
        // Predicated region
        $region117: #{tpu_custom_call.1} parent=107 // pred_check
          %p1623 = pneg %p306
        $region118: #{tpu_custom_call.1} parent=107 // pred_check_branch
          %1625 = sbr.rel (%p1623) target = $region120
        $region119: #{tpu_custom_call.1} parent=107 // pred_region
          %s1626 = sand.u32 %s37, 1
          %s1627 = scalar_lea.sflag [#allocation19], %s1626
          %s1628 = sand.u32 %s291, 1
          %s1629 = smul.addr %s1628, 16
          %s1630 = scalar_lea.vmem [#allocation20], %s1629
          %1631 = dma.done %s1627, 256
        $region120: #{tpu_custom_call.1} parent=107 // pred_fallthru
          _
      $region108: #{tpu_custom_call.1} parent=5 // pred_fallthru
        _
    $region6: #{tpu_custom_call.1} parent=1 // loop_footer
      %s35 = sadd.s32 1, %s31
    $region7: #{tpu_custom_call.1} parent=1 // loop_footer_branch
      %30 = sbr.rel target = $region3
    $region8: #{tpu_custom_call.1} parent=1 // loop_exit
      _
    %1632 = vsyncpa [#allocation3], 1
    %s1633 = scalar_lea.sflag [#allocation3], 1
    %1634 = vsyncpa %s1633, 1
    %1635 = vsyncpa [#allocation6], 1
    %1636 = vsyncpa [#allocation9], 1
    %1637 = vsyncpa [#allocation12], 1
    %1638 = vsyncpa [#allocation15], 1
    %1639 = vsyncpa [#allocation4], 1
    %s1640 = scalar_lea.sflag [#allocation4], 1
    %1641 = vsyncpa %s1640, 1
    %1642 = vsyncpa [#allocation19], 1
    %s1643 = scalar_lea.sflag [#allocation19], 1
    %1644 = vsyncpa %s1643, 1

</llo_original>
